<compile_context>
chip_gen: v5e
topology: v5e:2x2
jax: 0.10.0
libtpu: 0.0.40
codegen_flags: <defaults>
</compile_context>

<pallas_src>
import functools
import numpy as np
import jax
import jax.numpy as jnp
from jax import lax
from jax.experimental import pallas as pl
from jax.experimental.pallas import tpu as pltpu


# --------------------------------- fused kernel ---------------------------------

def _conv_module_kernel(xc_ref, xl_ref, xr_ref, ln_g_ref, ln_b_ref, w1_ref,
                        dw_ref, bn_scale_ref, bn_shift_ref, w2_ref, o_ref,
                        gp_ref, *, T_tile, H, C, K, ln_eps):
    """One (batch, T-tile) grid step of the fused ConvolutionModule forward."""
    pad = (K - 1) // 2

    def ln_pw1_glu(x_raw):
        # LayerNorm (single-pass stats on the lane axis) + pointwise conv1 (MXU) + GLU.
        x = x_raw.astype(jnp.float32)
        mean = jnp.mean(x, axis=-1, keepdims=True)
        mean_sq = jnp.mean(x * x, axis=-1, keepdims=True)
        var = jnp.maximum(mean_sq - mean * mean, 0.0)
        xn = (x - mean) * lax.rsqrt(var + ln_eps) * ln_g_ref[...] + ln_b_ref[...]
        y = jnp.dot(xn.astype(jnp.bfloat16), w1_ref[...],
                    preferred_element_type=jnp.float32)           # (rows, 2C)
        return y[:, :C] * jax.nn.sigmoid(y[:, C:])                 # GLU(channel)

    j = pl.program_id(1)
    nj = pl.num_programs(1)

    # Center rows of the zero-padded GLU activation live in a VMEM scratch.
    gp_ref[H:H + T_tile, :] = ln_pw1_glu(xc_ref[...])

    # Left halo: zeros at the sequence start ('same' zero padding), otherwise
    # recompute LN + pw1 + GLU on the last H rows of the previous tile.
    @pl.when(j == 0)
    def _():
        gp_ref[0:H, :] = jnp.zeros((H, C), jnp.float32)

    @pl.when(j > 0)
    def _():
        gp_ref[0:H, :] = ln_pw1_glu(xl_ref[...])

    # Right halo: zeros at the sequence end, otherwise the next tile's head.
    @pl.when(j == nj - 1)
    def _():
        gp_ref[H + T_tile:H + T_tile + H, :] = jnp.zeros((H, C), jnp.float32)

    @pl.when(j < nj - 1)
    def _():
        gp_ref[H + T_tile:H + T_tile + H, :] = ln_pw1_glu(xr_ref[...])

    # Depthwise conv along T: K static shifted MACs; every tap is read from the
    # scratch so the shift sits on the load path, not in-register shuffles.
    dw = dw_ref[...].astype(jnp.float32)                           # (K, C)
    off = H - pad
    acc = jnp.zeros((T_tile, C), jnp.float32)
    for k in range(K):                                             # K small & static
        # TODO(synk): dw_ref[pl.ds(k, T_tile, stride=0), :] would move this
        # per-tap row broadcast onto the vld slot once stride-0 ref slices are
        # available on this jax version.
        acc = acc + gp_ref[off + k:off + k + T_tile, :] * dw[k:k + 1, :]

    # BatchNorm (inference, folded to per-channel scale/shift) + SiLU + pw conv2.
    z = acc * bn_scale_ref[...] + bn_shift_ref[...]
    z = z * jax.nn.sigmoid(z)                                      # SiLU (EUP)
    out = jnp.dot(z.astype(jnp.bfloat16), w2_ref[...],
                  preferred_element_type=jnp.float32)              # (T_tile, E)
    o_ref[...] = out.astype(o_ref.dtype)


# ------------------------------ one-time weight prep ------------------------------

def prepare_params(params, *, kernel_size, bn_eps=1e-5):
    """Hoisted weight preparation (transposes, bf16 casts, BatchNorm fold).

    Call once; the result is what conv_module_forward consumes every step.
    """
    if (kernel_size - 1) % 2 != 0:
        raise ValueError(f"depthwise_kernel_size must be odd, got {kernel_size}")
    C = params["W_dw"].shape[0]
    inv = params["bn_gamma"] / jnp.sqrt(params["bn_rvar"] + bn_eps)
    return {
        "ln_g": params["ln_gamma"].reshape(1, -1).astype(jnp.float32),
        "ln_b": params["ln_beta"].reshape(1, -1).astype(jnp.float32),
        # (2C, E) -> (E, 2C): columns [:C] = GLU value half, [C:] = gate half.
        "w1": jnp.asarray(params["W_pw1"].T, jnp.bfloat16),
        "dw": jnp.asarray(params["W_dw"].T, jnp.float32),          # (K, C)
        "bn_scale": inv.reshape(1, C).astype(jnp.float32),
        "bn_shift": (params["bn_beta"] - params["bn_rmean"] * inv)
                    .reshape(1, C).astype(jnp.float32),
        "w2": jnp.asarray(params["W_pw2"].T, jnp.bfloat16),        # (C, E)
    }


# ----------------------------------- wrapper -----------------------------------

def _choose_tiles(T, K, t_tile_max):
    pad = (K - 1) // 2
    H = max(16, ((pad + 15) // 16) * 16)        # halo block rows: mult of 16, >= pad
    if T % H != 0:
        # TODO(synk): support ragged T by padding the sequence host-side.
        raise ValueError(f"T={T} must be a multiple of the halo block size {H}")
    t_tile, t = H, H
    cap = max(t_tile_max, H)
    while t <= min(T, cap):
        if T % t == 0:
            t_tile = t
        t += H
    return t_tile, H


def _vmem_limit_bytes(T_tile, H, E, C, K):
    f32, bf16 = 4, 2
    stream = 2 * ((T_tile + 2 * H) * E * f32 + T_tile * E * f32)   # x views + out (double buffered)
    weights = 2 * ((E * 2 * C + C * E) * bf16 + K * C * f32 + 2 * (E + C) * f32)
    scratch = (T_tile + 2 * H) * C * f32
    need = 2 * (stream + weights + scratch)                        # headroom for compiler temps
    # Never request all of v7x's 64 MiB physical VMEM.
    return int(min(max(need, 32 * 1024 * 1024), 56 * 1024 * 1024))


def conv_module_forward(prepared, x, *, kernel_size, ln_eps=1e-5, t_tile_max=256):
    """x: (B, T, E) float32 -> (B, T, E) float32.

    t_tile_max: sweep per generation -- ~256 on v7x (64 MiB VMEM), 512-1024 on
    v6e/v5e (128 MiB VMEM).
    """
    B, T, E = x.shape
    K = kernel_size
    C = prepared["dw"].shape[1]
    T_tile, H = _choose_tiles(T, K, t_tile_max)
    NT = T // T_tile               # number of T tiles
    NTH = T // H                   # number of halo-sized blocks along T
    R = T_tile // H                # halo blocks per tile

    kern = functools.partial(_conv_module_kernel,
                             T_tile=T_tile, H=H, C=C, K=K, ln_eps=ln_eps)
    rep = lambda b, j: (0, 0)      # constant (weight) blocks

    return pl.pallas_call(
        kern,
        out_shape=jax.ShapeDtypeStruct((B, T, E), x.dtype),
        grid_spec=pltpu.PrefetchScalarGridSpec(
            num_scalar_prefetch=0,
            grid=(B, NT),
            in_specs=[
                # center tile of x
                pl.BlockSpec((None, T_tile, E), lambda b, j: (b, j, 0)),
                # left / right halo views of x (clamped at the edges; the
                # kernel zeroes their contribution at the first / last tile)
                pl.BlockSpec((None, H, E),
                             lambda b, j: (b, jnp.maximum(j * R - 1, 0), 0)),
                pl.BlockSpec((None, H, E),
                             lambda b, j: (b, jnp.minimum((j + 1) * R, NTH - 1), 0)),
                pl.BlockSpec((1, E), rep),        # LayerNorm gamma
                pl.BlockSpec((1, E), rep),        # LayerNorm beta
                pl.BlockSpec((E, 2 * C), rep),    # fused pw-conv1 / GLU weight
                pl.BlockSpec((K, C), rep),        # depthwise weight
                pl.BlockSpec((1, C), rep),        # folded BN scale
                pl.BlockSpec((1, C), rep),        # folded BN shift
                pl.BlockSpec((C, E), rep),        # pw-conv2 weight
            ],
            out_specs=pl.BlockSpec((None, T_tile, E), lambda b, j: (b, j, 0)),
            scratch_shapes=[pltpu.VMEM((T_tile + 2 * H, C), jnp.float32)],
        ),
        compiler_params=pltpu.CompilerParams(
            dimension_semantics=("parallel", "parallel"),
            vmem_limit_bytes=_vmem_limit_bytes(T_tile, H, E, C, K),
        ),
    )(x, x, x,
      prepared["ln_g"], prepared["ln_b"], prepared["w1"], prepared["dw"],
      prepared["bn_scale"], prepared["bn_shift"], prepared["w2"])


# --------------------------------- parameter init ---------------------------------

def init_params(key, embed_dim, channels, kernel_size):
    ks = jax.random.split(key, 9)
    f32 = jnp.float32
    return {
        "ln_gamma": 1.0 + 0.1 * jax.random.normal(ks[0], (embed_dim,), f32),
        "ln_beta": 0.1 * jax.random.normal(ks[1], (embed_dim,), f32),
        "W_pw1": 0.1 * jax.random.normal(ks[2], (2 * channels, embed_dim), f32),
        "W_dw": 0.2 * jax.random.normal(ks[3], (channels, kernel_size), f32),
        "bn_gamma": 1.0 + 0.1 * jax.random.normal(ks[4], (channels,), f32),
        "bn_beta": 0.1 * jax.random.normal(ks[5], (channels,), f32),
        "bn_rmean": 0.1 * jax.random.normal(ks[6], (channels,), f32),
        "bn_rvar": 1.0 + 0.1 * jnp.abs(jax.random.normal(ks[7], (channels,), f32)),
        "W_pw2": 0.1 * jax.random.normal(ks[8], (embed_dim, channels), f32),
    }


# ------------------------------ pure-JAX reference ---------------------------------

def ref_forward(params, x, *, kernel_size, ln_eps=1e-5, bn_eps=1e-5):
    B, T, E = x.shape
    C = params["W_dw"].shape[0]
    K = kernel_size

    mean = jnp.mean(x, -1, keepdims=True)
    var = jnp.mean((x - mean) ** 2, -1, keepdims=True)
    x_ln = (x - mean) / jnp.sqrt(var + ln_eps) * params["ln_gamma"] + params["ln_beta"]

    y = jnp.einsum('bte,oe->bto', x_ln, params["W_pw1"])           # (B, T, 2C)
    g = y[..., :C] * jax.nn.sigmoid(y[..., C:])                    # GLU(dim=channel)

    pad = (K - 1) // 2
    gp = jnp.pad(g, ((0, 0), (pad, pad), (0, 0)))
    out = jnp.zeros_like(g)
    for k in range(K):
        out = out + gp[:, k:k + T, :] * params["W_dw"][:, k]

    z = (out - params["bn_rmean"]) / jnp.sqrt(params["bn_rvar"] + bn_eps) \
        * params["bn_gamma"] + params["bn_beta"]
    z = z * jax.nn.sigmoid(z)                                      # SiLU / swish

    return jnp.einsum('btc,ec->bte', z, params["W_pw2"])           # dropout = identity (eval)


# --------------------------------------- main ---------------------------------------

if __name__ == "__main__":
    # Small test shapes (lane-aligned E = C = 128); t_tile_max=16 forces 4 T-tiles
    # per batch so the left/right halo paths are all exercised.
    B, T = 2, 64
    embed_dim, channels, K = 128, 128, 7

    root = jax.random.PRNGKey(0)
    kp, kx = jax.random.split(root)
    raw = init_params(kp, embed_dim, channels, K)
    x = jax.random.normal(kx, (B, T, embed_dim), jnp.float32)

    prepared = prepare_params(raw, kernel_size=K)                  # one-time weight prep
    fwd = jax.jit(functools.partial(conv_module_forward, kernel_size=K, t_tile_max=16))

    out = jax.block_until_ready(fwd(prepared, x))
    assert out.shape == (B, T, embed_dim)

    ref = jax.block_until_ready(ref_forward(raw, x, kernel_size=K))
    if not np.allclose(np.asarray(out), np.asarray(ref), atol=2e-2, rtol=2e-2):
        raise AssertionError(
            "Pallas kernel does not match reference; max abs diff = %g"
            % float(np.max(np.abs(np.asarray(out) - np.asarray(ref)))))
    print("KERNEL_OK")
</pallas_src>

<mosaic_0001>
module attributes {stable_mosaic.version = 11 : i64} {
  func.func @_conv_module_kernel(%arg0: i32, %arg1: i32, %arg2: memref<1x16x128xf32, #tpu.memory_space<vmem>>, %arg3: memref<1x16x128xf32, #tpu.memory_space<vmem>>, %arg4: memref<1x16x128xf32, #tpu.memory_space<vmem>>, %arg5: memref<1x128xf32, #tpu.memory_space<vmem>>, %arg6: memref<1x128xf32, #tpu.memory_space<vmem>>, %arg7: memref<128x256xbf16, #tpu.memory_space<vmem>>, %arg8: memref<7x128xf32, #tpu.memory_space<vmem>>, %arg9: memref<1x128xf32, #tpu.memory_space<vmem>>, %arg10: memref<1x128xf32, #tpu.memory_space<vmem>>, %arg11: memref<128x128xbf16, #tpu.memory_space<vmem>>, %arg12: memref<1x16x128xf32, #tpu.memory_space<vmem>>, %arg13: memref<48x128xf32, #tpu.memory_space<vmem>>) attributes {dimension_semantics = [#tpu.dimension_semantics<parallel>, #tpu.dimension_semantics<parallel>], iteration_bounds = array<i64: 2, 4>, scalar_prefetch = 0 : i64, scratch_operands = 1 : i64, tpu.core_type = #tpu.core_type<tc>, window_params = [{transform_indices = @transform_0, window_bounds = array<i64: 1, 16, 128>}, {transform_indices = @transform_1, window_bounds = array<i64: 1, 16, 128>}, {transform_indices = @transform_2, window_bounds = array<i64: 1, 16, 128>}, {pipeline_mode = #tpu.pipeline_mode<synchronous>, transform_indices = @transform_3, window_bounds = array<i64: 1, 128>}, {pipeline_mode = #tpu.pipeline_mode<synchronous>, transform_indices = @transform_4, window_bounds = array<i64: 1, 128>}, {pipeline_mode = #tpu.pipeline_mode<synchronous>, transform_indices = @transform_5, window_bounds = array<i64: 128, 256>}, {pipeline_mode = #tpu.pipeline_mode<synchronous>, transform_indices = @transform_6, window_bounds = array<i64: 7, 128>}, {pipeline_mode = #tpu.pipeline_mode<synchronous>, transform_indices = @transform_7, window_bounds = array<i64: 1, 128>}, {pipeline_mode = #tpu.pipeline_mode<synchronous>, transform_indices = @transform_8, window_bounds = array<i64: 1, 128>}, {pipeline_mode = #tpu.pipeline_mode<synchronous>, transform_indices = @transform_9, window_bounds = array<i64: 128, 128>}, {transform_indices = @transform_10, window_bounds = array<i64: 1, 16, 128>}]} {
    %c0 = arith.constant 0 : index
    %c0_0 = arith.constant 0 : index
    %c0_1 = arith.constant 0 : index
    %0 = vector.load %arg2[%c0, %c0_0, %c0_1] : memref<1x16x128xf32, #tpu.memory_space<vmem>>, vector<1x16x128xf32>
    %1 = vector.shape_cast %0 : vector<1x16x128xf32> to vector<16x128xf32>
    %cst = arith.constant dense<0.000000e+00> : vector<16xf32>
    %2 = vector.multi_reduction <add>, %1, %cst [1] : vector<16x128xf32> to vector<16xf32>
    %3 = vector.shape_cast %2 : vector<16xf32> to vector<16x1xf32>
    %cst_2 = arith.constant 1.280000e+02 : f32
    %4 = vector.broadcast %cst_2 : f32 to vector<16x1xf32>
    %5 = arith.divf %3, %4 : vector<16x1xf32>
    %6 = arith.mulf %1, %1 : vector<16x128xf32>
    %cst_3 = arith.constant dense<0.000000e+00> : vector<16xf32>
    %7 = vector.multi_reduction <add>, %6, %cst_3 [1] : vector<16x128xf32> to vector<16xf32>
    %8 = vector.shape_cast %7 : vector<16xf32> to vector<16x1xf32>
    %cst_4 = arith.constant 1.280000e+02 : f32
    %9 = vector.broadcast %cst_4 : f32 to vector<16x1xf32>
    %10 = arith.divf %8, %9 : vector<16x1xf32>
    %11 = arith.mulf %5, %5 : vector<16x1xf32>
    %12 = arith.subf %10, %11 : vector<16x1xf32>
    %cst_5 = arith.constant 0.000000e+00 : f32
    %13 = vector.broadcast %cst_5 : f32 to vector<16x1xf32>
    %14 = arith.maximumf %12, %13 : vector<16x1xf32>
    %15 = vector.broadcast %5 : vector<16x1xf32> to vector<16x128xf32>
    %16 = arith.subf %1, %15 : vector<16x128xf32>
    %cst_6 = arith.constant 9.99999974E-6 : f32
    %17 = vector.broadcast %cst_6 : f32 to vector<16x1xf32>
    %18 = arith.addf %14, %17 : vector<16x1xf32>
    %19 = math.rsqrt %18 : vector<16x1xf32>
    %20 = vector.broadcast %19 : vector<16x1xf32> to vector<16x128xf32>
    %21 = arith.mulf %16, %20 : vector<16x128xf32>
    %c0_7 = arith.constant 0 : index
    %c0_8 = arith.constant 0 : index
    %22 = vector.load %arg5[%c0_7, %c0_8] : memref<1x128xf32, #tpu.memory_space<vmem>>, vector<1x128xf32>
    %23 = vector.broadcast %22 : vector<1x128xf32> to vector<16x128xf32>
    %24 = arith.mulf %21, %23 : vector<16x128xf32>
    %c0_9 = arith.constant 0 : index
    %c0_10 = arith.constant 0 : index
    %25 = vector.load %arg6[%c0_9, %c0_10] : memref<1x128xf32, #tpu.memory_space<vmem>>, vector<1x128xf32>
    %26 = vector.broadcast %25 : vector<1x128xf32> to vector<16x128xf32>
    %27 = arith.addf %24, %26 : vector<16x128xf32>
    %28 = arith.truncf %27 : vector<16x128xf32> to vector<16x128xbf16>
    %c0_11 = arith.constant 0 : index
    %c0_12 = arith.constant 0 : index
    %29 = vector.load %arg7[%c0_11, %c0_12] : memref<128x256xbf16, #tpu.memory_space<vmem>>, vector<128x256xbf16>
    %cst_13 = arith.constant dense<0.000000e+00> : vector<16x256xf32>
    %30 = tpu.matmul %28, %29, %cst_13 {dimension_numbers = #tpu.dot_dimension_numbers<[1], [0], [0], [1], [0, 0, 1, 1], [], []>} : vector<16x128xbf16>, vector<128x256xbf16>, vector<16x256xf32> -> vector<16x256xf32>
    %31 = vector.extract_strided_slice %30 {offsets = [0, 0], sizes = [16, 128], strides = [1, 1]} : vector<16x256xf32> to vector<16x128xf32>
    %32 = vector.extract_strided_slice %30 {offsets = [0, 128], sizes = [16, 128], strides = [1, 1]} : vector<16x256xf32> to vector<16x128xf32>
    %33 = arith.negf %32 : vector<16x128xf32>
    %34 = math.exp %33 : vector<16x128xf32>
    %cst_14 = arith.constant 1.000000e+00 : f32
    %35 = vector.broadcast %cst_14 : f32 to vector<16x128xf32>
    %36 = arith.addf %35, %34 : vector<16x128xf32>
    %37 = arith.divf %35, %36 : vector<16x128xf32>
    %38 = arith.mulf %31, %37 : vector<16x128xf32>
    %c16 = arith.constant 16 : index
    %c0_15 = arith.constant 0 : index
    %39 = vector.load %arg13[%c16, %c0_15] : memref<48x128xf32, #tpu.memory_space<vmem>>, vector<16x128xf32>
    tpu.vector_store %arg13[%c16, %c0_15], %38 {strides = array<i32>} : memref<48x128xf32, #tpu.memory_space<vmem>>, vector<16x128xf32>,
    %c0_i32 = arith.constant 0 : i32
    %40 = arith.cmpi eq, %arg1, %c0_i32 : i32
    %41 = arith.extui %40 : i1 to i32
    %c0_i32_16 = arith.constant 0 : i32
    %42 = arith.cmpi ne, %41, %c0_i32_16 : i32
    scf.if %42 {
      %cst_44 = arith.constant 0.000000e+00 : f32
      %107 = vector.broadcast %cst_44 : f32 to vector<16x128xf32>
      %c0_45 = arith.constant 0 : index
      %c0_46 = arith.constant 0 : index
      %108 = vector.load %arg13[%c0_45, %c0_46] : memref<48x128xf32, #tpu.memory_space<vmem>>, vector<16x128xf32>
      tpu.vector_store %arg13[%c0_45, %c0_46], %107 {strides = array<i32>} : memref<48x128xf32, #tpu.memory_space<vmem>>, vector<16x128xf32>,
    } else {
    }
    %c0_i32_17 = arith.constant 0 : i32
    %43 = arith.cmpi sgt, %arg1, %c0_i32_17 : i32
    %44 = arith.extui %43 : i1 to i32
    %c0_i32_18 = arith.constant 0 : i32
    %45 = arith.cmpi ne, %44, %c0_i32_18 : i32
    scf.if %45 {
      %c0_44 = arith.constant 0 : index
      %c0_45 = arith.constant 0 : index
      %c0_46 = arith.constant 0 : index
      %107 = vector.load %arg3[%c0_44, %c0_45, %c0_46] : memref<1x16x128xf32, #tpu.memory_space<vmem>>, vector<1x16x128xf32>
      %108 = vector.shape_cast %107 : vector<1x16x128xf32> to vector<16x128xf32>
      %cst_47 = arith.constant dense<0.000000e+00> : vector<16xf32>
      %109 = vector.multi_reduction <add>, %108, %cst_47 [1] : vector<16x128xf32> to vector<16xf32>
      %110 = vector.shape_cast %109 : vector<16xf32> to vector<16x1xf32>
      %cst_48 = arith.constant 1.280000e+02 : f32
      %111 = vector.broadcast %cst_48 : f32 to vector<16x1xf32>
      %112 = arith.divf %110, %111 : vector<16x1xf32>
      %113 = arith.mulf %108, %108 : vector<16x128xf32>
      %cst_49 = arith.constant dense<0.000000e+00> : vector<16xf32>
      %114 = vector.multi_reduction <add>, %113, %cst_49 [1] : vector<16x128xf32> to vector<16xf32>
      %115 = vector.shape_cast %114 : vector<16xf32> to vector<16x1xf32>
      %cst_50 = arith.constant 1.280000e+02 : f32
      %116 = vector.broadcast %cst_50 : f32 to vector<16x1xf32>
      %117 = arith.divf %115, %116 : vector<16x1xf32>
      %118 = arith.mulf %112, %112 : vector<16x1xf32>
      %119 = arith.subf %117, %118 : vector<16x1xf32>
      %cst_51 = arith.constant 0.000000e+00 : f32
      %120 = vector.broadcast %cst_51 : f32 to vector<16x1xf32>
      %121 = arith.maximumf %119, %120 : vector<16x1xf32>
      %122 = vector.broadcast %112 : vector<16x1xf32> to vector<16x128xf32>
      %123 = arith.subf %108, %122 : vector<16x128xf32>
      %cst_52 = arith.constant 9.99999974E-6 : f32
      %124 = vector.broadcast %cst_52 : f32 to vector<16x1xf32>
      %125 = arith.addf %121, %124 : vector<16x1xf32>
      %126 = math.rsqrt %125 : vector<16x1xf32>
      %127 = vector.broadcast %126 : vector<16x1xf32> to vector<16x128xf32>
      %128 = arith.mulf %123, %127 : vector<16x128xf32>
      %c0_53 = arith.constant 0 : index
      %c0_54 = arith.constant 0 : index
      %129 = vector.load %arg5[%c0_53, %c0_54] : memref<1x128xf32, #tpu.memory_space<vmem>>, vector<1x128xf32>
      %130 = vector.broadcast %129 : vector<1x128xf32> to vector<16x128xf32>
      %131 = arith.mulf %128, %130 : vector<16x128xf32>
      %c0_55 = arith.constant 0 : index
      %c0_56 = arith.constant 0 : index
      %132 = vector.load %arg6[%c0_55, %c0_56] : memref<1x128xf32, #tpu.memory_space<vmem>>, vector<1x128xf32>
      %133 = vector.broadcast %132 : vector<1x128xf32> to vector<16x128xf32>
      %134 = arith.addf %131, %133 : vector<16x128xf32>
      %135 = arith.truncf %134 : vector<16x128xf32> to vector<16x128xbf16>
      %c0_57 = arith.constant 0 : index
      %c0_58 = arith.constant 0 : index
      %136 = vector.load %arg7[%c0_57, %c0_58] : memref<128x256xbf16, #tpu.memory_space<vmem>>, vector<128x256xbf16>
      %cst_59 = arith.constant dense<0.000000e+00> : vector<16x256xf32>
      %137 = tpu.matmul %135, %136, %cst_59 {dimension_numbers = #tpu.dot_dimension_numbers<[1], [0], [0], [1], [0, 0, 1, 1], [], []>} : vector<16x128xbf16>, vector<128x256xbf16>, vector<16x256xf32> -> vector<16x256xf32>
      %138 = vector.extract_strided_slice %137 {offsets = [0, 0], sizes = [16, 128], strides = [1, 1]} : vector<16x256xf32> to vector<16x128xf32>
      %139 = vector.extract_strided_slice %137 {offsets = [0, 128], sizes = [16, 128], strides = [1, 1]} : vector<16x256xf32> to vector<16x128xf32>
      %140 = arith.negf %139 : vector<16x128xf32>
      %141 = math.exp %140 : vector<16x128xf32>
      %cst_60 = arith.constant 1.000000e+00 : f32
      %142 = vector.broadcast %cst_60 : f32 to vector<16x128xf32>
      %143 = arith.addf %142, %141 : vector<16x128xf32>
      %144 = arith.divf %142, %143 : vector<16x128xf32>
      %145 = arith.mulf %138, %144 : vector<16x128xf32>
      %c0_61 = arith.constant 0 : index
      %c0_62 = arith.constant 0 : index
      %146 = vector.load %arg13[%c0_61, %c0_62] : memref<48x128xf32, #tpu.memory_space<vmem>>, vector<16x128xf32>
      tpu.vector_store %arg13[%c0_61, %c0_62], %145 {strides = array<i32>} : memref<48x128xf32, #tpu.memory_space<vmem>>, vector<16x128xf32>,
    } else {
    }
    %c3_i32 = arith.constant 3 : i32
    %46 = arith.cmpi eq, %arg1, %c3_i32 : i32
    %47 = arith.extui %46 : i1 to i32
    %c0_i32_19 = arith.constant 0 : i32
    %48 = arith.cmpi ne, %47, %c0_i32_19 : i32
    scf.if %48 {
      %cst_44 = arith.constant 0.000000e+00 : f32
      %107 = vector.broadcast %cst_44 : f32 to vector<16x128xf32>
      %c32 = arith.constant 32 : index
      %c0_45 = arith.constant 0 : index
      %108 = vector.load %arg13[%c32, %c0_45] : memref<48x128xf32, #tpu.memory_space<vmem>>, vector<16x128xf32>
      tpu.vector_store %arg13[%c32, %c0_45], %107 {strides = array<i32>} : memref<48x128xf32, #tpu.memory_space<vmem>>, vector<16x128xf32>,
    } else {
    }
    %c3_i32_20 = arith.constant 3 : i32
    %49 = arith.cmpi slt, %arg1, %c3_i32_20 : i32
    %50 = arith.extui %49 : i1 to i32
    %c0_i32_21 = arith.constant 0 : i32
    %51 = arith.cmpi ne, %50, %c0_i32_21 : i32
    scf.if %51 {
      %c0_44 = arith.constant 0 : index
      %c0_45 = arith.constant 0 : index
      %c0_46 = arith.constant 0 : index
      %107 = vector.load %arg4[%c0_44, %c0_45, %c0_46] : memref<1x16x128xf32, #tpu.memory_space<vmem>>, vector<1x16x128xf32>
      %108 = vector.shape_cast %107 : vector<1x16x128xf32> to vector<16x128xf32>
      %cst_47 = arith.constant dense<0.000000e+00> : vector<16xf32>
      %109 = vector.multi_reduction <add>, %108, %cst_47 [1] : vector<16x128xf32> to vector<16xf32>
      %110 = vector.shape_cast %109 : vector<16xf32> to vector<16x1xf32>
      %cst_48 = arith.constant 1.280000e+02 : f32
      %111 = vector.broadcast %cst_48 : f32 to vector<16x1xf32>
      %112 = arith.divf %110, %111 : vector<16x1xf32>
      %113 = arith.mulf %108, %108 : vector<16x128xf32>
      %cst_49 = arith.constant dense<0.000000e+00> : vector<16xf32>
      %114 = vector.multi_reduction <add>, %113, %cst_49 [1] : vector<16x128xf32> to vector<16xf32>
      %115 = vector.shape_cast %114 : vector<16xf32> to vector<16x1xf32>
      %cst_50 = arith.constant 1.280000e+02 : f32
      %116 = vector.broadcast %cst_50 : f32 to vector<16x1xf32>
      %117 = arith.divf %115, %116 : vector<16x1xf32>
      %118 = arith.mulf %112, %112 : vector<16x1xf32>
      %119 = arith.subf %117, %118 : vector<16x1xf32>
      %cst_51 = arith.constant 0.000000e+00 : f32
      %120 = vector.broadcast %cst_51 : f32 to vector<16x1xf32>
      %121 = arith.maximumf %119, %120 : vector<16x1xf32>
      %122 = vector.broadcast %112 : vector<16x1xf32> to vector<16x128xf32>
      %123 = arith.subf %108, %122 : vector<16x128xf32>
      %cst_52 = arith.constant 9.99999974E-6 : f32
      %124 = vector.broadcast %cst_52 : f32 to vector<16x1xf32>
      %125 = arith.addf %121, %124 : vector<16x1xf32>
      %126 = math.rsqrt %125 : vector<16x1xf32>
      %127 = vector.broadcast %126 : vector<16x1xf32> to vector<16x128xf32>
      %128 = arith.mulf %123, %127 : vector<16x128xf32>
      %c0_53 = arith.constant 0 : index
      %c0_54 = arith.constant 0 : index
      %129 = vector.load %arg5[%c0_53, %c0_54] : memref<1x128xf32, #tpu.memory_space<vmem>>, vector<1x128xf32>
      %130 = vector.broadcast %129 : vector<1x128xf32> to vector<16x128xf32>
      %131 = arith.mulf %128, %130 : vector<16x128xf32>
      %c0_55 = arith.constant 0 : index
      %c0_56 = arith.constant 0 : index
      %132 = vector.load %arg6[%c0_55, %c0_56] : memref<1x128xf32, #tpu.memory_space<vmem>>, vector<1x128xf32>
      %133 = vector.broadcast %132 : vector<1x128xf32> to vector<16x128xf32>
      %134 = arith.addf %131, %133 : vector<16x128xf32>
      %135 = arith.truncf %134 : vector<16x128xf32> to vector<16x128xbf16>
      %c0_57 = arith.constant 0 : index
      %c0_58 = arith.constant 0 : index
      %136 = vector.load %arg7[%c0_57, %c0_58] : memref<128x256xbf16, #tpu.memory_space<vmem>>, vector<128x256xbf16>
      %cst_59 = arith.constant dense<0.000000e+00> : vector<16x256xf32>
      %137 = tpu.matmul %135, %136, %cst_59 {dimension_numbers = #tpu.dot_dimension_numbers<[1], [0], [0], [1], [0, 0, 1, 1], [], []>} : vector<16x128xbf16>, vector<128x256xbf16>, vector<16x256xf32> -> vector<16x256xf32>
      %138 = vector.extract_strided_slice %137 {offsets = [0, 0], sizes = [16, 128], strides = [1, 1]} : vector<16x256xf32> to vector<16x128xf32>
      %139 = vector.extract_strided_slice %137 {offsets = [0, 128], sizes = [16, 128], strides = [1, 1]} : vector<16x256xf32> to vector<16x128xf32>
      %140 = arith.negf %139 : vector<16x128xf32>
      %141 = math.exp %140 : vector<16x128xf32>
      %cst_60 = arith.constant 1.000000e+00 : f32
      %142 = vector.broadcast %cst_60 : f32 to vector<16x128xf32>
      %143 = arith.addf %142, %141 : vector<16x128xf32>
      %144 = arith.divf %142, %143 : vector<16x128xf32>
      %145 = arith.mulf %138, %144 : vector<16x128xf32>
      %c32 = arith.constant 32 : index
      %c0_61 = arith.constant 0 : index
      %146 = vector.load %arg13[%c32, %c0_61] : memref<48x128xf32, #tpu.memory_space<vmem>>, vector<16x128xf32>
      tpu.vector_store %arg13[%c32, %c0_61], %145 {strides = array<i32>} : memref<48x128xf32, #tpu.memory_space<vmem>>, vector<16x128xf32>,
    } else {
    }
    %c0_22 = arith.constant 0 : index
    %c0_23 = arith.constant 0 : index
    %52 = vector.load %arg8[%c0_22, %c0_23] : memref<7x128xf32, #tpu.memory_space<vmem>>, vector<7x128xf32>
    %cst_24 = arith.constant 0.000000e+00 : f32
    %53 = vector.broadcast %cst_24 : f32 to vector<16x128xf32>
    %c13 = arith.constant 13 : index
    %c0_25 = arith.constant 0 : index
    %54 = vector.load %arg13[%c13, %c0_25] : memref<48x128xf32, #tpu.memory_space<vmem>>, vector<16x128xf32>
    %55 = vector.extract_strided_slice %52 {offsets = [0, 0], sizes = [1, 128], strides = [1, 1]} : vector<7x128xf32> to vector<1x128xf32>
    %56 = vector.broadcast %55 : vector<1x128xf32> to vector<16x128xf32>
    %57 = arith.mulf %54, %56 : vector<16x128xf32>
    %58 = arith.addf %53, %57 : vector<16x128xf32>
    %c14 = arith.constant 14 : index
    %c0_26 = arith.constant 0 : index
    %59 = vector.load %arg13[%c14, %c0_26] : memref<48x128xf32, #tpu.memory_space<vmem>>, vector<16x128xf32>
    %60 = vector.extract_strided_slice %52 {offsets = [1, 0], sizes = [1, 128], strides = [1, 1]} : vector<7x128xf32> to vector<1x128xf32>
    %61 = vector.broadcast %60 : vector<1x128xf32> to vector<16x128xf32>
    %62 = arith.mulf %59, %61 : vector<16x128xf32>
    %63 = arith.addf %58, %62 : vector<16x128xf32>
    %c15 = arith.constant 15 : index
    %c0_27 = arith.constant 0 : index
    %64 = vector.load %arg13[%c15, %c0_27] : memref<48x128xf32, #tpu.memory_space<vmem>>, vector<16x128xf32>
    %65 = vector.extract_strided_slice %52 {offsets = [2, 0], sizes = [1, 128], strides = [1, 1]} : vector<7x128xf32> to vector<1x128xf32>
    %66 = vector.broadcast %65 : vector<1x128xf32> to vector<16x128xf32>
    %67 = arith.mulf %64, %66 : vector<16x128xf32>
    %68 = arith.addf %63, %67 : vector<16x128xf32>
    %c16_28 = arith.constant 16 : index
    %c0_29 = arith.constant 0 : index
    %69 = vector.load %arg13[%c16_28, %c0_29] : memref<48x128xf32, #tpu.memory_space<vmem>>, vector<16x128xf32>
    %70 = vector.extract_strided_slice %52 {offsets = [3, 0], sizes = [1, 128], strides = [1, 1]} : vector<7x128xf32> to vector<1x128xf32>
    %71 = vector.broadcast %70 : vector<1x128xf32> to vector<16x128xf32>
    %72 = arith.mulf %69, %71 : vector<16x128xf32>
    %73 = arith.addf %68, %72 : vector<16x128xf32>
    %c17 = arith.constant 17 : index
    %c0_30 = arith.constant 0 : index
    %74 = vector.load %arg13[%c17, %c0_30] : memref<48x128xf32, #tpu.memory_space<vmem>>, vector<16x128xf32>
    %75 = vector.extract_strided_slice %52 {offsets = [4, 0], sizes = [1, 128], strides = [1, 1]} : vector<7x128xf32> to vector<1x128xf32>
    %76 = vector.broadcast %75 : vector<1x128xf32> to vector<16x128xf32>
    %77 = arith.mulf %74, %76 : vector<16x128xf32>
    %78 = arith.addf %73, %77 : vector<16x128xf32>
    %c18 = arith.constant 18 : index
    %c0_31 = arith.constant 0 : index
    %79 = vector.load %arg13[%c18, %c0_31] : memref<48x128xf32, #tpu.memory_space<vmem>>, vector<16x128xf32>
    %80 = vector.extract_strided_slice %52 {offsets = [5, 0], sizes = [1, 128], strides = [1, 1]} : vector<7x128xf32> to vector<1x128xf32>
    %81 = vector.broadcast %80 : vector<1x128xf32> to vector<16x128xf32>
    %82 = arith.mulf %79, %81 : vector<16x128xf32>
    %83 = arith.addf %78, %82 : vector<16x128xf32>
    %c19 = arith.constant 19 : index
    %c0_32 = arith.constant 0 : index
    %84 = vector.load %arg13[%c19, %c0_32] : memref<48x128xf32, #tpu.memory_space<vmem>>, vector<16x128xf32>
    %85 = vector.extract_strided_slice %52 {offsets = [6, 0], sizes = [1, 128], strides = [1, 1]} : vector<7x128xf32> to vector<1x128xf32>
    %86 = vector.broadcast %85 : vector<1x128xf32> to vector<16x128xf32>
    %87 = arith.mulf %84, %86 : vector<16x128xf32>
    %88 = arith.addf %83, %87 : vector<16x128xf32>
    %c0_33 = arith.constant 0 : index
    %c0_34 = arith.constant 0 : index
    %89 = vector.load %arg9[%c0_33, %c0_34] : memref<1x128xf32, #tpu.memory_space<vmem>>, vector<1x128xf32>
    %90 = vector.broadcast %89 : vector<1x128xf32> to vector<16x128xf32>
    %91 = arith.mulf %88, %90 : vector<16x128xf32>
    %c0_35 = arith.constant 0 : index
    %c0_36 = arith.constant 0 : index
    %92 = vector.load %arg10[%c0_35, %c0_36] : memref<1x128xf32, #tpu.memory_space<vmem>>, vector<1x128xf32>
    %93 = vector.broadcast %92 : vector<1x128xf32> to vector<16x128xf32>
    %94 = arith.addf %91, %93 : vector<16x128xf32>
    %95 = arith.negf %94 : vector<16x128xf32>
    %96 = math.exp %95 : vector<16x128xf32>
    %cst_37 = arith.constant 1.000000e+00 : f32
    %97 = vector.broadcast %cst_37 : f32 to vector<16x128xf32>
    %98 = arith.addf %97, %96 : vector<16x128xf32>
    %99 = arith.divf %97, %98 : vector<16x128xf32>
    %100 = arith.mulf %94, %99 : vector<16x128xf32>
    %101 = arith.truncf %100 : vector<16x128xf32> to vector<16x128xbf16>
    %c0_38 = arith.constant 0 : index
    %c0_39 = arith.constant 0 : index
    %102 = vector.load %arg11[%c0_38, %c0_39] : memref<128x128xbf16, #tpu.memory_space<vmem>>, vector<128x128xbf16>
    %cst_40 = arith.constant dense<0.000000e+00> : vector<16x128xf32>
    %103 = tpu.matmul %101, %102, %cst_40 {dimension_numbers = #tpu.dot_dimension_numbers<[1], [0], [0], [1], [0, 0, 1, 1], [], []>} : vector<16x128xbf16>, vector<128x128xbf16>, vector<16x128xf32> -> vector<16x128xf32>
    %c0_41 = arith.constant 0 : index
    %c0_42 = arith.constant 0 : index
    %c0_43 = arith.constant 0 : index
    %104 = vector.load %arg12[%c0_41, %c0_42, %c0_43] : memref<1x16x128xf32, #tpu.memory_space<vmem>>, vector<1x16x128xf32>
    %105 = vector.shape_cast %104 : vector<1x16x128xf32> to vector<16x128xf32>
    %106 = vector.shape_cast %103 : vector<16x128xf32> to vector<1x16x128xf32>
    tpu.vector_store %arg12[%c0_41, %c0_42, %c0_43], %106 {strides = array<i32>} : memref<1x16x128xf32, #tpu.memory_space<vmem>>, vector<1x16x128xf32>,
    return
  }
  func.func @transform_0(%arg0: i32, %arg1: i32) -> (i32, i32, i32) {
    %c0_i32 = arith.constant 0 : i32
    %c0_i32_0 = arith.constant 0 : i32
    return %arg0, %arg1, %c0_i32 : i32, i32, i32
  }
  func.func @transform_1(%arg0: i32, %arg1: i32) -> (i32, i32, i32) {
    %c1_i32 = arith.constant 1 : i32
    %0 = arith.muli %arg1, %c1_i32 : i32
    %c1_i32_0 = arith.constant 1 : i32
    %1 = arith.subi %0, %c1_i32_0 : i32
    %c0_i32 = arith.constant 0 : i32
    %2 = arith.maxsi %1, %c0_i32 : i32
    %c0_i32_1 = arith.constant 0 : i32
    %c0_i32_2 = arith.constant 0 : i32
    return %arg0, %2, %c0_i32_1 : i32, i32, i32
  }
  func.func @transform_2(%arg0: i32, %arg1: i32) -> (i32, i32, i32) {
    %c1_i32 = arith.constant 1 : i32
    %0 = arith.addi %arg1, %c1_i32 : i32
    %c1_i32_0 = arith.constant 1 : i32
    %1 = arith.muli %0, %c1_i32_0 : i32
    %c3_i32 = arith.constant 3 : i32
    %2 = arith.minsi %1, %c3_i32 : i32
    %c0_i32 = arith.constant 0 : i32
    %c0_i32_1 = arith.constant 0 : i32
    return %arg0, %2, %c0_i32 : i32, i32, i32
  }
  func.func @transform_3(%arg0: i32, %arg1: i32) -> (i32, i32) {
    %c0_i32 = arith.constant 0 : i32
    %c0_i32_0 = arith.constant 0 : i32
    %c0_i32_1 = arith.constant 0 : i32
    return %c0_i32, %c0_i32_0 : i32, i32
  }
  func.func @transform_4(%arg0: i32, %arg1: i32) -> (i32, i32) {
    %c0_i32 = arith.constant 0 : i32
    %c0_i32_0 = arith.constant 0 : i32
    %c0_i32_1 = arith.constant 0 : i32
    return %c0_i32, %c0_i32_0 : i32, i32
  }
  func.func @transform_5(%arg0: i32, %arg1: i32) -> (i32, i32) {
    %c0_i32 = arith.constant 0 : i32
    %c0_i32_0 = arith.constant 0 : i32
    %c0_i32_1 = arith.constant 0 : i32
    return %c0_i32, %c0_i32_0 : i32, i32
  }
  func.func @transform_6(%arg0: i32, %arg1: i32) -> (i32, i32) {
    %c0_i32 = arith.constant 0 : i32
    %c0_i32_0 = arith.constant 0 : i32
    %c0_i32_1 = arith.constant 0 : i32
    return %c0_i32, %c0_i32_0 : i32, i32
  }
  func.func @transform_7(%arg0: i32, %arg1: i32) -> (i32, i32) {
    %c0_i32 = arith.constant 0 : i32
    %c0_i32_0 = arith.constant 0 : i32
    %c0_i32_1 = arith.constant 0 : i32
    return %c0_i32, %c0_i32_0 : i32, i32
  }
  func.func @transform_8(%arg0: i32, %arg1: i32) -> (i32, i32) {
    %c0_i32 = arith.constant 0 : i32
    %c0_i32_0 = arith.constant 0 : i32
    %c0_i32_1 = arith.constant 0 : i32
    return %c0_i32, %c0_i32_0 : i32, i32
  }
  func.func @transform_9(%arg0: i32, %arg1: i32) -> (i32, i32) {
    %c0_i32 = arith.constant 0 : i32
    %c0_i32_0 = arith.constant 0 : i32
    %c0_i32_1 = arith.constant 0 : i32
    return %c0_i32, %c0_i32_0 : i32, i32
  }
  func.func @transform_10(%arg0: i32, %arg1: i32) -> (i32, i32, i32) {
    %c0_i32 = arith.constant 0 : i32
    %c0_i32_0 = arith.constant 0 : i32
    return %arg0, %arg1, %c0_i32 : i32, i32, i32
  }
}

</mosaic_0001>

<llo_original>
// kernel: conv_module_forward.1
$region0: #{conv_module_forward.1}
  #allocation0 [shape = 'u32[]', space=smem, size = 0x4, offset = 0x4, fixed_abs, tag = 'smem constant byte address 0x4 - core index']
  #allocation1 [shape = 'u32[72,128]{1,0:T(1,128)}', space=vmem, size = 0x9000, scoped, tag = 'internal scratch']
  #allocation2 [shape = 'f32[48,128]{1,0:T(8,128)}', space=vmem, size = 0x6000, scoped, tag = 'scratch operand']
  %s0 = inlined_call_operand.hbm [shape: f32[2,64,128], index: 0, kind: input, shape index: {}, may-alias: {0,1,2}]
  %s1 = inlined_call_operand.hbm [shape: f32[2,64,128], index: 1, kind: input, shape index: {}, may-alias: {0,1,2}]
  %s2 = inlined_call_operand.hbm [shape: f32[2,64,128], index: 2, kind: input, shape index: {}, may-alias: {0,1,2}]
  %s3 = inlined_call_operand.vmem [shape: f32[1,128], index: 3, kind: input, shape index: {}]
  %s4 = inlined_call_operand.vmem [shape: f32[1,128], index: 4, kind: input, shape index: {}]
  %s5 = inlined_call_operand.hbm [shape: bf16[128,256], index: 5, kind: input, shape index: {}]
  %s6 = inlined_call_operand.hbm [shape: f32[7,128], index: 6, kind: input, shape index: {}]
  %s7 = inlined_call_operand.hbm [shape: f32[1,128], index: 7, kind: input, shape index: {}]
  %s8 = inlined_call_operand.hbm [shape: f32[1,128], index: 8, kind: input, shape index: {}]
  %s9 = inlined_call_operand.hbm [shape: bf16[128,128], index: 9, kind: input, shape index: {}]
  %s10 = inlined_call_operand.hbm [shape: f32[2,64,128], index: 10, kind: output, shape index: {}]
  %s11 = sld [smem:[#allocation0]]
  $region121: #{conv_module_forward.1} parent=0
    _
  %s13 = ssub.s32 1, %s11
  %s14 = scalar_select 0, %s13, %s11
  $region1: #{conv_module_forward.1} parent=0
    #allocation3 [shape = 'u8[16384]{0}', space=vmem, size = 0x4000, scoped, tag = 'input window, operand 0']
    #allocation4 [shape = 's32[2]{0}', space=sflag, size = 0x8, scoped, tag = 'scoped memory for conv_module_forward.1']
    #allocation5 [shape = 's32[2]{0}', space=sflag, size = 0x8, scoped, tag = 'scoped memory for conv_module_forward.1']
    #allocation6 [shape = 'u8[16384]{0}', space=vmem, size = 0x4000, scoped, tag = 'input window, operand 1']
    #allocation7 [shape = 's32[2]{0}', space=sflag, size = 0x8, scoped, tag = 'scoped memory for conv_module_forward.1']
    #allocation8 [shape = 'u8[16384]{0}', space=vmem, size = 0x4000, scoped, tag = 'input window, operand 2']
    #allocation9 [shape = 'u8[65536]{0}', space=vmem, size = 0x10000, scoped, tag = 'input window, operand 5, single buffered']
    #allocation10 [shape = 's32[1]{0}', space=sflag, size = 0x4, scoped, tag = 'scoped memory for conv_module_forward.1']
    #allocation11 [shape = 'u8[4096]{0}', space=vmem, size = 0x1000, scoped, tag = 'input window, operand 6, single buffered']
    #allocation12 [shape = 'u8[512]{0}', space=vmem, size = 0x400, scoped, tag = 'input window, operand 7, single buffered']
    #allocation13 [shape = 's32[1]{0}', space=sflag, size = 0x4, scoped, tag = 'scoped memory for conv_module_forward.1']
    #allocation14 [shape = 'u8[512]{0}', space=vmem, size = 0x400, scoped, tag = 'input window, operand 8, single buffered']
    #allocation15 [shape = 'u8[32768]{0}', space=vmem, size = 0x8000, scoped, tag = 'input window, operand 9, single buffered']
    #allocation16 [shape = 's32[1]{0}', space=sflag, size = 0x4, scoped, tag = 'scoped memory for conv_module_forward.1']
    #allocation17 [shape = 'u8[16384]{0}', space=vmem, size = 0x4000, scoped, tag = 'output window, operand 0']
    %15 = vsyncpa [#allocation4], 0
    %s16 = scalar_lea.sflag [#allocation4], 1
    %17 = vsyncpa %s16, 0
    %18 = vsyncpa [#allocation7], 0
    %s19 = scalar_lea.sflag [#allocation7], 1
    %20 = vsyncpa %s19, 0
    %21 = vsyncpa [#allocation10], 0
    %22 = vsyncpa [#allocation13], 0
    %23 = vsyncpa [#allocation16], 0
    %24 = vsyncpa [#allocation5], 0
    %s25 = scalar_lea.sflag [#allocation5], 1
    %26 = vsyncpa %s25, 0
    loop: start=0, step=1, limit=10
    $region2: #{conv_module_forward.1} parent=1 // loop_pre_header
      _
    $region3: #{conv_module_forward.1} parent=1 // loop_header
      %s28 = sphi 0, %s32
      %p29 = scmp.ge.s32.totalorder %s28, 10
      %s35 = sphi 0, %s47
      %s36 = sphi 0, %s43
      %s37 = sphi 0, %s35
      %s38 = sphi 0, %s36
      %s39 = sphi 0, %s37
      %s40 = sphi 0, %s38
      %s52 = sphi 0, %s54
      %s55 = sphi 0, %s52
      %s56 = sphi 0, %s55
      %s72 = sphi 0, %s56
      %s86 = sphi 0, %s88
      %s89 = sphi 0, %s86
      %s90 = sphi 0, %s89
      %s106 = sphi 0, %s90
      %s120 = sphi 0, %s122
      %s123 = sphi 0, %s120
      %s124 = sphi 0, %s123
      %s140 = sphi 0, %s124
      %s144 = sphi 0, %s144
      %s146 = sphi 0, %s144
      %s147 = sphi 0, %s146
      %s161 = sphi 0, %s147
      %s165 = sphi 0, %s165
      %s167 = sphi 0, %s165
      %s168 = sphi 0, %s167
      %s182 = sphi 0, %s168
      %s186 = sphi 0, %s186
      %s188 = sphi 0, %s186
      %s189 = sphi 0, %s188
      %s203 = sphi 0, %s189
      %s207 = sphi 0, %s207
      %s209 = sphi 0, %s207
      %s210 = sphi 0, %s209
      %s224 = sphi 0, %s210
      %s228 = sphi 0, %s228
      %s230 = sphi 0, %s228
      %s231 = sphi 0, %s230
      %s245 = sphi 0, %s231
      %s249 = sphi 0, %s249
      %s251 = sphi 0, %s249
      %s252 = sphi 0, %s251
      %s266 = sphi 0, %s252
      %s270 = sphi 0, %s270
      %s272 = sphi 0, %s270
      %s273 = sphi 0, %s272
      %s287 = sphi 0, %s273
      %s295 = sphi 0, %s297
      %s298 = sphi 0, %s295
      %s299 = sphi 0, %s298
      %s315 = sphi 0, %s299
    $region4: #{conv_module_forward.1} parent=1 // loop_header_branch
      %31 = sbr.rel (%p29) target = $region8
    $region5: #{conv_module_forward.1} parent=1 // loop_body
      %s33 = ssub.s32 %s28, 1
      %s34 = ssub.s32 %s28, 2
      %s41 = sadd.s32 1, %s36
      %p42 = scmp.ge.s32.totalorder %s41, 4
      %s43 = scalar_select %p42, 0, %s41
      %s44 = sadd.s32 1, %s35
      %s45 = scalar_select %p42, %s44, %s35
      %p46 = scmp.ge.s32.totalorder %s45, 2
      %s47 = scalar_select %p46, 0, %s45
      %s48 = ssub.s32 %s35, %s47
      %s49 = ssub.s32 %s36, %s43
      %s50 = sor.u32 %s48, %s49
      %p51 = scmp.eq.s32.totalorder %s50, 0
      %s53 = sadd.s32 %s52, 1
      %s54 = scalar_select %p51, %s52, %s53
      %p57 = pneg %p51
      %p58 = scmp.eq.s32.totalorder %s28, 7
      %p59 = por %p57, %p58
      %p60 = scmp.ne.s32.totalorder %s52, %s55
      %p61 = scmp.eq.s32.totalorder %s28, 0
      %p62 = por %p60, %p61
      %p63 = scmp.ne.s32.totalorder %s52, %s55
      %p64 = scmp.eq.s32.totalorder %s33, 7
      %p65 = por %p63, %p64
      %p66 = scmp.ne.s32.totalorder %s55, %s56
      %p67 = scmp.eq.s32.totalorder %s33, 0
      %p68 = por %p66, %p67
      %p69 = scmp.ne.s32.totalorder %s55, %s56
      %p70 = scmp.eq.s32.totalorder %s34, 7
      %p71 = por %p69, %p70
      %p73 = scmp.ne.s32.totalorder %s56, %s72
      %p74 = scmp.eq.s32.totalorder %s34, 0
      %p75 = por %p73, %p74
      %s76 = ssub.s32 %s36, 1
      %p77 = scmp.gt.s32.totalorder %s76, 0
      %s78 = scalar_select %p77, %s76, 0
      %s79 = ssub.s32 %s43, 1
      %p80 = scmp.gt.s32.totalorder %s79, 0
      %s81 = scalar_select %p80, %s79, 0
      %s82 = ssub.s32 %s35, %s47
      %s83 = ssub.s32 %s78, %s81
      %s84 = sor.u32 %s82, %s83
      %p85 = scmp.eq.s32.totalorder %s84, 0
      %s87 = sadd.s32 %s86, 1
      %s88 = scalar_select %p85, %s86, %s87
      %p91 = pneg %p85
      %p92 = scmp.eq.s32.totalorder %s28, 7
      %p93 = por %p91, %p92
      %p94 = scmp.ne.s32.totalorder %s86, %s89
      %p95 = scmp.eq.s32.totalorder %s28, 0
      %p96 = por %p94, %p95
      %p97 = scmp.ne.s32.totalorder %s86, %s89
      %p98 = scmp.eq.s32.totalorder %s33, 7
      %p99 = por %p97, %p98
      %p100 = scmp.ne.s32.totalorder %s89, %s90
      %p101 = scmp.eq.s32.totalorder %s33, 0
      %p102 = por %p100, %p101
      %p103 = scmp.ne.s32.totalorder %s89, %s90
      %p104 = scmp.eq.s32.totalorder %s34, 7
      %p105 = por %p103, %p104
      %p107 = scmp.ne.s32.totalorder %s90, %s106
      %p108 = scmp.eq.s32.totalorder %s34, 0
      %p109 = por %p107, %p108
      %s110 = sadd.s32 %s36, 1
      %p111 = scmp.lt.s32.totalorder %s110, 3
      %s112 = scalar_select %p111, %s110, 3
      %s113 = sadd.s32 %s43, 1
      %p114 = scmp.lt.s32.totalorder %s113, 3
      %s115 = scalar_select %p114, %s113, 3
      %s116 = ssub.s32 %s35, %s47
      %s117 = ssub.s32 %s112, %s115
      %s118 = sor.u32 %s116, %s117
      %p119 = scmp.eq.s32.totalorder %s118, 0
      %s121 = sadd.s32 %s120, 1
      %s122 = scalar_select %p119, %s120, %s121
      %p125 = pneg %p119
      %p126 = scmp.eq.s32.totalorder %s28, 7
      %p127 = por %p125, %p126
      %p128 = scmp.ne.s32.totalorder %s120, %s123
      %p129 = scmp.eq.s32.totalorder %s28, 0
      %p130 = por %p128, %p129
      %p131 = scmp.ne.s32.totalorder %s120, %s123
      %p132 = scmp.eq.s32.totalorder %s33, 7
      %p133 = por %p131, %p132
      %p134 = scmp.ne.s32.totalorder %s123, %s124
      %p135 = scmp.eq.s32.totalorder %s33, 0
      %p136 = por %p134, %p135
      %p137 = scmp.ne.s32.totalorder %s123, %s124
      %p138 = scmp.eq.s32.totalorder %s34, 7
      %p139 = por %p137, %p138
      %p141 = scmp.ne.s32.totalorder %s124, %s140
      %p142 = scmp.eq.s32.totalorder %s34, 0
      %p143 = por %p141, %p142
      %s145 = sadd.s32 %s144, 1
      %p148 = scmp.eq.s32.totalorder %s28, 7
      %p149 = scmp.ne.s32.totalorder %s144, %s146
      %p150 = scmp.eq.s32.totalorder %s28, 0
      %p151 = por %p149, %p150
      %p152 = scmp.ne.s32.totalorder %s144, %s146
      %p153 = scmp.eq.s32.totalorder %s33, 7
      %p154 = por %p152, %p153
      %p155 = scmp.ne.s32.totalorder %s146, %s147
      %p156 = scmp.eq.s32.totalorder %s33, 0
      %p157 = por %p155, %p156
      %p158 = scmp.ne.s32.totalorder %s146, %s147
      %p159 = scmp.eq.s32.totalorder %s34, 7
      %p160 = por %p158, %p159
      %p162 = scmp.ne.s32.totalorder %s147, %s161
      %p163 = scmp.eq.s32.totalorder %s34, 0
      %p164 = por %p162, %p163
      %s166 = sadd.s32 %s165, 1
      %p169 = scmp.eq.s32.totalorder %s28, 7
      %p170 = scmp.ne.s32.totalorder %s165, %s167
      %p171 = scmp.eq.s32.totalorder %s28, 0
      %p172 = por %p170, %p171
      %p173 = scmp.ne.s32.totalorder %s165, %s167
      %p174 = scmp.eq.s32.totalorder %s33, 7
      %p175 = por %p173, %p174
      %p176 = scmp.ne.s32.totalorder %s167, %s168
      %p177 = scmp.eq.s32.totalorder %s33, 0
      %p178 = por %p176, %p177
      %p179 = scmp.ne.s32.totalorder %s167, %s168
      %p180 = scmp.eq.s32.totalorder %s34, 7
      %p181 = por %p179, %p180
      %p183 = scmp.ne.s32.totalorder %s168, %s182
      %p184 = scmp.eq.s32.totalorder %s34, 0
      %p185 = por %p183, %p184
      %s187 = sadd.s32 %s186, 1
      %p190 = scmp.eq.s32.totalorder %s28, 7
      %p191 = scmp.ne.s32.totalorder %s186, %s188
      %p192 = scmp.eq.s32.totalorder %s28, 0
      %p193 = por %p191, %p192
      %p194 = scmp.ne.s32.totalorder %s186, %s188
      %p195 = scmp.eq.s32.totalorder %s33, 7
      %p196 = por %p194, %p195
      %p197 = scmp.ne.s32.totalorder %s188, %s189
      %p198 = scmp.eq.s32.totalorder %s33, 0
      %p199 = por %p197, %p198
      %p200 = scmp.ne.s32.totalorder %s188, %s189
      %p201 = scmp.eq.s32.totalorder %s34, 7
      %p202 = por %p200, %p201
      %p204 = scmp.ne.s32.totalorder %s189, %s203
      %p205 = scmp.eq.s32.totalorder %s34, 0
      %p206 = por %p204, %p205
      %s208 = sadd.s32 %s207, 1
      %p211 = scmp.eq.s32.totalorder %s28, 7
      %p212 = scmp.ne.s32.totalorder %s207, %s209
      %p213 = scmp.eq.s32.totalorder %s28, 0
      %p214 = por %p212, %p213
      %p215 = scmp.ne.s32.totalorder %s207, %s209
      %p216 = scmp.eq.s32.totalorder %s33, 7
      %p217 = por %p215, %p216
      %p218 = scmp.ne.s32.totalorder %s209, %s210
      %p219 = scmp.eq.s32.totalorder %s33, 0
      %p220 = por %p218, %p219
      %p221 = scmp.ne.s32.totalorder %s209, %s210
      %p222 = scmp.eq.s32.totalorder %s34, 7
      %p223 = por %p221, %p222
      %p225 = scmp.ne.s32.totalorder %s210, %s224
      %p226 = scmp.eq.s32.totalorder %s34, 0
      %p227 = por %p225, %p226
      %s229 = sadd.s32 %s228, 1
      %p232 = scmp.eq.s32.totalorder %s28, 7
      %p233 = scmp.ne.s32.totalorder %s228, %s230
      %p234 = scmp.eq.s32.totalorder %s28, 0
      %p235 = por %p233, %p234
      %p236 = scmp.ne.s32.totalorder %s228, %s230
      %p237 = scmp.eq.s32.totalorder %s33, 7
      %p238 = por %p236, %p237
      %p239 = scmp.ne.s32.totalorder %s230, %s231
      %p240 = scmp.eq.s32.totalorder %s33, 0
      %p241 = por %p239, %p240
      %p242 = scmp.ne.s32.totalorder %s230, %s231
      %p243 = scmp.eq.s32.totalorder %s34, 7
      %p244 = por %p242, %p243
      %p246 = scmp.ne.s32.totalorder %s231, %s245
      %p247 = scmp.eq.s32.totalorder %s34, 0
      %p248 = por %p246, %p247
      %s250 = sadd.s32 %s249, 1
      %p253 = scmp.eq.s32.totalorder %s28, 7
      %p254 = scmp.ne.s32.totalorder %s249, %s251
      %p255 = scmp.eq.s32.totalorder %s28, 0
      %p256 = por %p254, %p255
      %p257 = scmp.ne.s32.totalorder %s249, %s251
      %p258 = scmp.eq.s32.totalorder %s33, 7
      %p259 = por %p257, %p258
      %p260 = scmp.ne.s32.totalorder %s251, %s252
      %p261 = scmp.eq.s32.totalorder %s33, 0
      %p262 = por %p260, %p261
      %p263 = scmp.ne.s32.totalorder %s251, %s252
      %p264 = scmp.eq.s32.totalorder %s34, 7
      %p265 = por %p263, %p264
      %p267 = scmp.ne.s32.totalorder %s252, %s266
      %p268 = scmp.eq.s32.totalorder %s34, 0
      %p269 = por %p267, %p268
      %s271 = sadd.s32 %s270, 1
      %p274 = scmp.eq.s32.totalorder %s28, 7
      %p275 = scmp.ne.s32.totalorder %s270, %s272
      %p276 = scmp.eq.s32.totalorder %s28, 0
      %p277 = por %p275, %p276
      %p278 = scmp.ne.s32.totalorder %s270, %s272
      %p279 = scmp.eq.s32.totalorder %s33, 7
      %p280 = por %p278, %p279
      %p281 = scmp.ne.s32.totalorder %s272, %s273
      %p282 = scmp.eq.s32.totalorder %s33, 0
      %p283 = por %p281, %p282
      %p284 = scmp.ne.s32.totalorder %s272, %s273
      %p285 = scmp.eq.s32.totalorder %s34, 7
      %p286 = por %p284, %p285
      %p288 = scmp.ne.s32.totalorder %s273, %s287
      %p289 = scmp.eq.s32.totalorder %s34, 0
      %p290 = por %p288, %p289
      %s291 = ssub.s32 %s35, %s47
      %s292 = ssub.s32 %s36, %s43
      %s293 = sor.u32 %s291, %s292
      %p294 = scmp.eq.s32.totalorder %s293, 0
      %s296 = sadd.s32 %s295, 1
      %s297 = scalar_select %p294, %s295, %s296
      %p300 = pneg %p294
      %p301 = scmp.eq.s32.totalorder %s28, 7
      %p302 = por %p300, %p301
      %p303 = scmp.ne.s32.totalorder %s295, %s298
      %p304 = scmp.eq.s32.totalorder %s28, 0
      %p305 = por %p303, %p304
      %p306 = scmp.ne.s32.totalorder %s295, %s298
      %p307 = scmp.eq.s32.totalorder %s33, 7
      %p308 = por %p306, %p307
      %p309 = scmp.ne.s32.totalorder %s298, %s299
      %p310 = scmp.eq.s32.totalorder %s33, 0
      %p311 = por %p309, %p310
      %p312 = scmp.ne.s32.totalorder %s298, %s299
      %p313 = scmp.eq.s32.totalorder %s34, 7
      %p314 = por %p312, %p313
      %p316 = scmp.ne.s32.totalorder %s299, %s315
      %p317 = scmp.eq.s32.totalorder %s34, 0
      %p318 = por %p316, %p317
      %p319 = scmp.le.s32.totalorder 1, %s28
      %p320 = scmp.lt.s32.totalorder %s28, 9
      %p321 = pnand %p319, %p320
      %p322 = pneg %p321
      // Predicated region
      $region9: #{conv_module_forward.1} parent=5 // pred_check
        _
      $region10: #{conv_module_forward.1} parent=5 // pred_check_branch
        %324 = sbr.rel (%p321) target = $region12
      $region11: #{conv_module_forward.1} parent=5 // pred_region
        %s325 = ssub.s32 %s28, 1
        // Predicated region
        $region13: #{conv_module_forward.1} parent=11 // pred_check
          %p326 = pneg %p157
        $region14: #{conv_module_forward.1} parent=11 // pred_check_branch
          %328 = sbr.rel (%p326) target = $region16
        $region15: #{conv_module_forward.1} parent=11 // pred_region
          _
        $region16: #{conv_module_forward.1} parent=11 // pred_fallthru
          _
        // Predicated region
        $region17: #{conv_module_forward.1} parent=11 // pred_check
          %p329 = pneg %p178
        $region18: #{conv_module_forward.1} parent=11 // pred_check_branch
          %331 = sbr.rel (%p329) target = $region20
        $region19: #{conv_module_forward.1} parent=11 // pred_region
          _
        $region20: #{conv_module_forward.1} parent=11 // pred_fallthru
          _
        // Predicated region
        $region21: #{conv_module_forward.1} parent=11 // pred_check
          %p332 = pneg %p199
        $region22: #{conv_module_forward.1} parent=11 // pred_check_branch
          %334 = sbr.rel (%p332) target = $region24
        $region23: #{conv_module_forward.1} parent=11 // pred_region
          %336 = vsyncadd [#allocation10], 0
          %s337 = sshll.u32 %s5, 4
          %s338 = int_to_ptr.hbm [resolvable:$true] %s337
          %s339 = sshll.u32 [#allocation9], 4
          %s340 = int_to_ptr.vmem [resolvable:$true] %s339
          %345 = dma.hbm_to_vmem [thread:$0]  %s338, 2048, %s340, [#allocation10], 128, 128, 8
        $region24: #{conv_module_forward.1} parent=11 // pred_fallthru
          _
        // Predicated region
        $region25: #{conv_module_forward.1} parent=11 // pred_check
          %p346 = pneg %p220
        $region26: #{conv_module_forward.1} parent=11 // pred_check_branch
          %348 = sbr.rel (%p346) target = $region28
        $region27: #{conv_module_forward.1} parent=11 // pred_region
          %350 = vsyncadd [#allocation10], 0
          %s352 = sshll.u32 %s6, 4
          %s353 = int_to_ptr.hbm [resolvable:$true] %s352
          %s354 = sshll.u32 [#allocation11], 4
          %s355 = int_to_ptr.vmem [resolvable:$true] %s354
          %357 = dma.hbm_to_vmem [thread:$0]  %s353, 128, %s355, [#allocation10]
        $region28: #{conv_module_forward.1} parent=11 // pred_fallthru
          _
        // Predicated region
        $region29: #{conv_module_forward.1} parent=11 // pred_check
          %p358 = pneg %p241
        $region30: #{conv_module_forward.1} parent=11 // pred_check_branch
          %360 = sbr.rel (%p358) target = $region32
        $region31: #{conv_module_forward.1} parent=11 // pred_region
          %362 = vsyncadd [#allocation13], 0
          %s364 = sshll.u32 %s7, 4
          %s365 = int_to_ptr.hbm [resolvable:$true] %s364
          %s366 = sshll.u32 [#allocation12], 4
          %s367 = int_to_ptr.vmem [resolvable:$true] %s366
          %369 = dma.hbm_to_vmem [thread:$0]  %s365, 16, %s367, [#allocation13]
        $region32: #{conv_module_forward.1} parent=11 // pred_fallthru
          _
        // Predicated region
        $region33: #{conv_module_forward.1} parent=11 // pred_check
          %p370 = pneg %p262
        $region34: #{conv_module_forward.1} parent=11 // pred_check_branch
          %372 = sbr.rel (%p370) target = $region36
        $region35: #{conv_module_forward.1} parent=11 // pred_region
          %374 = vsyncadd [#allocation13], 0
          %s376 = sshll.u32 %s8, 4
          %s377 = int_to_ptr.hbm [resolvable:$true] %s376
          %s378 = sshll.u32 [#allocation14], 4
          %s379 = int_to_ptr.vmem [resolvable:$true] %s378
          %381 = dma.hbm_to_vmem [thread:$0]  %s377, 16, %s379, [#allocation13]
        $region36: #{conv_module_forward.1} parent=11 // pred_fallthru
          _
        // Predicated region
        $region37: #{conv_module_forward.1} parent=11 // pred_check
          %p382 = pneg %p283
        $region38: #{conv_module_forward.1} parent=11 // pred_check_branch
          %384 = sbr.rel (%p382) target = $region40
        $region39: #{conv_module_forward.1} parent=11 // pred_region
          %386 = vsyncadd [#allocation16], 0
          %s387 = sshll.u32 %s9, 4
          %s388 = int_to_ptr.hbm [resolvable:$true] %s387
          %s389 = sshll.u32 [#allocation15], 4
          %s390 = int_to_ptr.vmem [resolvable:$true] %s389
          %395 = dma.hbm_to_vmem [thread:$0]  %s388, 1024, %s390, [#allocation16], 64, 64, 4
        $region40: #{conv_module_forward.1} parent=11 // pred_fallthru
          _
      $region12: #{conv_module_forward.1} parent=5 // pred_fallthru
        _
      %p396 = scmp.lt.s32.totalorder %s28, 8
      // Predicated region
      $region41: #{conv_module_forward.1} parent=5 // pred_check
        %p397 = pneg %p396
      $region42: #{conv_module_forward.1} parent=5 // pred_check_branch
        %399 = sbr.rel (%p397) target = $region44
      $region43: #{conv_module_forward.1} parent=5 // pred_region
        // Predicated region
        $region45: #{conv_module_forward.1} parent=43 // pred_check
          %p400 = pneg %p62
        $region46: #{conv_module_forward.1} parent=43 // pred_check_branch
          %402 = sbr.rel (%p400) target = $region48
        $region47: #{conv_module_forward.1} parent=43 // pred_region
          %s403 = sand.u32 %s52, 1
          %s404 = scalar_lea.sflag [#allocation4], %s403
          %s405 = sand.u32 %s52, 1
          %s406 = smul.addr %s405, 16
          %s407 = scalar_lea.vmem [#allocation3], %s406
          %s408 = smul.u32 2, %s36
          %410 = vsyncadd %s404, 0
          %s411 = smul.addr %s35, 8
          %s412 = sadd.s32 %s408, %s411
          %s413 = smul.addr %s412, 8
          %s414 = scalar_lea.hbm %s0, %s413
          %s415 = sshll.u32 %s414, 4
          %s416 = int_to_ptr.hbm [resolvable:$true] %s415
          %s417 = sshll.u32 %s407, 4
          %s418 = int_to_ptr.vmem [resolvable:$true] %s417
          %423 = dma.hbm_to_vmem [thread:$0]  %s416, 256, %s418, %s404, 128, 128, 8
        $region48: #{conv_module_forward.1} parent=43 // pred_fallthru
          _
        // Predicated region
        $region49: #{conv_module_forward.1} parent=43 // pred_check
          %p424 = pneg %p96
        $region50: #{conv_module_forward.1} parent=43 // pred_check_branch
          %426 = sbr.rel (%p424) target = $region52
        $region51: #{conv_module_forward.1} parent=43 // pred_region
          %s427 = sand.u32 %s28, 1
          %s428 = scalar_lea.sflag [#allocation7], %s427
          %s429 = sand.u32 %s86, 1
          %s430 = smul.addr %s429, 16
          %s431 = scalar_lea.vmem [#allocation6], %s430
          %s432 = ssub.s32 %s36, 1
          %p433 = scmp.gt.s32.totalorder %s432, 0
          %s434 = scalar_select %p433, %s432, 0
          %s435 = smul.u32 2, %s434
          %437 = vsyncadd %s428, 0
          %s438 = smul.addr %s35, 8
          %s439 = sadd.s32 %s435, %s438
          %s440 = smul.addr %s439, 8
          %s441 = scalar_lea.hbm %s1, %s440
          %s442 = sshll.u32 %s441, 4
          %s443 = int_to_ptr.hbm [resolvable:$true] %s442
          %s444 = sshll.u32 %s431, 4
          %s445 = int_to_ptr.vmem [resolvable:$true] %s444
          %450 = dma.hbm_to_vmem [thread:$0]  %s443, 256, %s445, %s428, 128, 128, 8
        $region52: #{conv_module_forward.1} parent=43 // pred_fallthru
          _
        // Predicated region
        $region53: #{conv_module_forward.1} parent=43 // pred_check
          %p451 = pneg %p130
        $region54: #{conv_module_forward.1} parent=43 // pred_check_branch
          %453 = sbr.rel (%p451) target = $region56
        $region55: #{conv_module_forward.1} parent=43 // pred_region
          %s454 = sand.u32 %s28, 1
          %s455 = scalar_lea.sflag [#allocation7], %s454
          %s456 = sand.u32 %s120, 1
          %s457 = smul.addr %s456, 16
          %s458 = scalar_lea.vmem [#allocation8], %s457
          %s459 = sadd.s32 %s36, 1
          %p460 = scmp.lt.s32.totalorder %s459, 3
          %s461 = scalar_select %p460, %s459, 3
          %s462 = smul.u32 2, %s461
          %464 = vsyncadd %s455, 0
          %s465 = smul.addr %s35, 8
          %s466 = sadd.s32 %s462, %s465
          %s467 = smul.addr %s466, 8
          %s468 = scalar_lea.hbm %s2, %s467
          %s469 = sshll.u32 %s468, 4
          %s470 = int_to_ptr.hbm [resolvable:$true] %s469
          %s471 = sshll.u32 %s458, 4
          %s472 = int_to_ptr.vmem [resolvable:$true] %s471
          %477 = dma.hbm_to_vmem [thread:$0]  %s470, 256, %s472, %s455, 128, 128, 8
        $region56: #{conv_module_forward.1} parent=43 // pred_fallthru
          _
      $region44: #{conv_module_forward.1} parent=5 // pred_fallthru
        _
      %p478 = scmp.le.s32.totalorder 1, %s28
      %p479 = scmp.lt.s32.totalorder %s28, 9
      %p480 = pnand %p478, %p479
      %p481 = pneg %p480
      // Predicated region
      $region57: #{conv_module_forward.1} parent=5 // pred_check
        _
      $region58: #{conv_module_forward.1} parent=5 // pred_check_branch
        %483 = sbr.rel (%p480) target = $region60
      $region59: #{conv_module_forward.1} parent=5 // pred_region
        %s484 = ssub.s32 %s28, 1
        %s485 = sand.u32 %s55, 1
        %s486 = scalar_lea.sflag [#allocation4], %s485
        %s487 = sand.u32 %s55, 1
        %s488 = smul.addr %s487, 16
        %s489 = scalar_lea.vmem [#allocation3], %s488
        // Predicated region
        $region61: #{conv_module_forward.1} parent=59 // pred_check
          %p490 = pneg %p68
        $region62: #{conv_module_forward.1} parent=59 // pred_check_branch
          %492 = sbr.rel (%p490) target = $region64
        $region63: #{conv_module_forward.1} parent=59 // pred_region
          %494 = dma.done %s486, 256
        $region64: #{conv_module_forward.1} parent=59 // pred_fallthru
          _
        %s495 = sand.u32 %s33, 1
        %s496 = scalar_lea.sflag [#allocation7], %s495
        %s497 = sand.u32 %s89, 1
        %s498 = smul.addr %s497, 16
        %s499 = scalar_lea.vmem [#allocation6], %s498
        // Predicated region
        $region65: #{conv_module_forward.1} parent=59 // pred_check
          %p500 = pneg %p102
        $region66: #{conv_module_forward.1} parent=59 // pred_check_branch
          %502 = sbr.rel (%p500) target = $region68
        $region67: #{conv_module_forward.1} parent=59 // pred_region
          %504 = dma.done %s496, 256
        $region68: #{conv_module_forward.1} parent=59 // pred_fallthru
          _
        %s505 = sand.u32 %s33, 1
        %s506 = scalar_lea.sflag [#allocation7], %s505
        %s507 = sand.u32 %s123, 1
        %s508 = smul.addr %s507, 16
        %s509 = scalar_lea.vmem [#allocation8], %s508
        // Predicated region
        $region69: #{conv_module_forward.1} parent=59 // pred_check
          %p510 = pneg %p136
        $region70: #{conv_module_forward.1} parent=59 // pred_check_branch
          %512 = sbr.rel (%p510) target = $region72
        $region71: #{conv_module_forward.1} parent=59 // pred_region
          %514 = dma.done %s506, 256
        $region72: #{conv_module_forward.1} parent=59 // pred_fallthru
          _
        // Predicated region
        $region73: #{conv_module_forward.1} parent=59 // pred_check
          %p515 = pneg %p199
        $region74: #{conv_module_forward.1} parent=59 // pred_check_branch
          %517 = sbr.rel (%p515) target = $region76
        $region75: #{conv_module_forward.1} parent=59 // pred_region
          %519 = dma.done [#allocation10], 2048
        $region76: #{conv_module_forward.1} parent=59 // pred_fallthru
          _
        // Predicated region
        $region77: #{conv_module_forward.1} parent=59 // pred_check
          %p520 = pneg %p220
        $region78: #{conv_module_forward.1} parent=59 // pred_check_branch
          %522 = sbr.rel (%p520) target = $region80
        $region79: #{conv_module_forward.1} parent=59 // pred_region
          %524 = dma.done [#allocation10], 128
        $region80: #{conv_module_forward.1} parent=59 // pred_fallthru
          _
        // Predicated region
        $region81: #{conv_module_forward.1} parent=59 // pred_check
          %p525 = pneg %p241
        $region82: #{conv_module_forward.1} parent=59 // pred_check_branch
          %527 = sbr.rel (%p525) target = $region84
        $region83: #{conv_module_forward.1} parent=59 // pred_region
          %529 = dma.done [#allocation13], 16
        $region84: #{conv_module_forward.1} parent=59 // pred_fallthru
          _
        // Predicated region
        $region85: #{conv_module_forward.1} parent=59 // pred_check
          %p530 = pneg %p262
        $region86: #{conv_module_forward.1} parent=59 // pred_check_branch
          %532 = sbr.rel (%p530) target = $region88
        $region87: #{conv_module_forward.1} parent=59 // pred_region
          %534 = dma.done [#allocation13], 16
        $region88: #{conv_module_forward.1} parent=59 // pred_fallthru
          _
        // Predicated region
        $region89: #{conv_module_forward.1} parent=59 // pred_check
          %p535 = pneg %p283
        $region90: #{conv_module_forward.1} parent=59 // pred_check_branch
          %537 = sbr.rel (%p535) target = $region92
        $region91: #{conv_module_forward.1} parent=59 // pred_region
          %539 = dma.done [#allocation16], 1024
        $region92: #{conv_module_forward.1} parent=59 // pred_fallthru
          _
        %s540 = sand.u32 %s55, 1
        %s541 = scalar_lea.sflag [#allocation4], %s540
        %s542 = sand.u32 %s55, 1
        %s543 = smul.addr %s542, 16
        %s544 = scalar_lea.vmem [#allocation3], %s543
        %p545 = pneg %p68
        %p546 = pneg %p65
        %s547 = sand.u32 %s33, 1
        %s548 = scalar_lea.sflag [#allocation7], %s547
        %s549 = sand.u32 %s89, 1
        %s550 = smul.addr %s549, 16
        %s551 = scalar_lea.vmem [#allocation6], %s550
        %p552 = pneg %p102
        %p553 = pneg %p99
        %s554 = sand.u32 %s33, 1
        %s555 = scalar_lea.sflag [#allocation7], %s554
        %s556 = sand.u32 %s123, 1
        %s557 = smul.addr %s556, 16
        %s558 = scalar_lea.vmem [#allocation8], %s557
        %p559 = pneg %p136
        %p560 = pneg %p133
        %p561 = pneg %p157
        %p562 = pneg %p154
        %p563 = pneg %p178
        %p564 = pneg %p175
        %p565 = pneg %p199
        %p566 = pneg %p196
        %p567 = pneg %p220
        %p568 = pneg %p217
        %p569 = pneg %p241
        %p570 = pneg %p238
        %p571 = pneg %p262
        %p572 = pneg %p259
        %p573 = pneg %p283
        %p574 = pneg %p280
        %p575 = pneg %p311
        %p576 = pneg %p308
        %s577 = sand.u32 %s298, 1
        %s578 = scalar_lea.sflag [#allocation5], %s577
        %s579 = sand.u32 %s298, 1
        %s580 = smul.addr %s579, 16
        %s581 = scalar_lea.vmem [#allocation17], %s580
        %s582 = smul.u32 2, %s38
        %s583 = ssub.s32 %s38, 1
        %p584 = scmp.gt.s32.totalorder %s583, 0
        %s585 = scalar_select %p584, %s583, 0
        %s586 = smul.u32 2, %s585
        %s587 = sadd.s32 %s38, 1
        %p588 = scmp.lt.s32.totalorder %s587, 3
        %s589 = scalar_select %p588, %s587, 3
        %s590 = smul.u32 2, %s589
        %s591 = smul.u32 2, %s38
        %v592 = vld [vmem:[%s489] sm:$0xff]
        %v593 = vld [vmem:[%s489 + $0x8] sm:$0xff]
        %594 = vadd.xlane.f32.xlu0 %v592
        %v595 = vpop.xlane.xlu0 %594
        %596 = vadd.xlane.f32.xlu0 %v593
        %v597 = vpop.xlane.xlu0 %596
        %v598 = vrcp.pop 128.0
        %v599 = vmul.f32 128.0, %v598
        %v600 = vsub.f32 1.0, %v599
        %v601 = vmul.f32 %v598, %v600
        %v602 = vadd.f32 %v598, %v601
        %vm603 = vweird.f32 %v598
        %v604 = vsel %vm603, %v598, %v602
        %v605 = vmul.f32 %v595, %v604
        %v606 = vmul.f32 %v597, %v604
        %v607 = vmul.f32 %v592, %v592
        %v608 = vmul.f32 %v593, %v593
        %609 = vadd.xlane.f32.xlu0 %v607
        %v610 = vpop.xlane.xlu0 %609
        %611 = vadd.xlane.f32.xlu0 %v608
        %v612 = vpop.xlane.xlu0 %611
        %v613 = vmul.f32 %v610, %v604
        %v614 = vmul.f32 %v612, %v604
        %v615 = vmul.f32 %v605, %v605
        %v616 = vmul.f32 %v606, %v606
        %v617 = vsub.f32 %v613, %v615
        %v618 = vsub.f32 %v614, %v616
        %v619 = vmax.f32 %v617, 0.0
        %v620 = vmax.f32 %v618, 0.0
        %v621 = vsub.f32 %v592, %v605
        %v622 = vsub.f32 %v593, %v606
        %v623 = vadd.f32 %v619, 1e-05
        %v624 = vadd.f32 %v620, 1e-05
        %v625 = vrsqrt.pop %v623
        %v626 = vmul.f32 %v625, %v623
        %v627 = vmul.f32 %v626, %v625
        %v628 = vmul.f32 0.5, %v627
        %v629 = vsub.f32 1.5, %v628
        %v630 = vmul.f32 %v625, %v629
        %vm631 = vweird.f32 %v623
        %vm632 = vweird.f32 %v625
        %vm633 = vmor %vm631, %vm632
        %v634 = vsel %vm633, %v625, %v630
        %v635 = vrsqrt.pop %v624
        %v636 = vmul.f32 %v635, %v624
        %v637 = vmul.f32 %v636, %v635
        %v638 = vmul.f32 0.5, %v637
        %v639 = vsub.f32 1.5, %v638
        %v640 = vmul.f32 %v635, %v639
        %vm641 = vweird.f32 %v624
        %vm642 = vweird.f32 %v635
        %vm643 = vmor %vm641, %vm642
        %v644 = vsel %vm643, %v635, %v640
        %v645 = vmul.f32 %v621, %v634
        %v646 = vmul.f32 %v622, %v644
        %v647 = vld [vmem:[%s3] sm:$0x1]
        %v649 = vperm.slane %v647, 0
        %v651 = vmul.f32 %v645, %v649
        %v652 = vmul.f32 %v646, %v649
        %v653 = vld [vmem:[%s4] sm:$0x1]
        %v655 = vperm.slane %v653, 0
        %v657 = vadd.f32 %v651, %v655
        %v658 = vadd.f32 %v652, %v655
        %v659 = vpack.c.bf16 %v658, %v657
        %v660 = vld [vmem:[#allocation9] sm:$0xff]
        %v661 = vld [vmem:[#allocation9 + $0x8] sm:$0xff]
        %v662 = vld [vmem:[#allocation9 + $0x10] sm:$0xff]
        %v663 = vld [vmem:[#allocation9 + $0x18] sm:$0xff]
        %v664 = vld [vmem:[#allocation9 + $0x20] sm:$0xff]
        %v665 = vld [vmem:[#allocation9 + $0x28] sm:$0xff]
        %v666 = vld [vmem:[#allocation9 + $0x30] sm:$0xff]
        %v667 = vld [vmem:[#allocation9 + $0x38] sm:$0xff]
        %v668 = vld [vmem:[#allocation9 + $0x40] sm:$0xff]
        %v669 = vld [vmem:[#allocation9 + $0x48] sm:$0xff]
        %v670 = vld [vmem:[#allocation9 + $0x50] sm:$0xff]
        %v671 = vld [vmem:[#allocation9 + $0x58] sm:$0xff]
        %v672 = vld [vmem:[#allocation9 + $0x60] sm:$0xff]
        %v673 = vld [vmem:[#allocation9 + $0x68] sm:$0xff]
        %v674 = vld [vmem:[#allocation9 + $0x70] sm:$0xff]
        %v675 = vld [vmem:[#allocation9 + $0x78] sm:$0xff]
        %v692 = vunpack.c.l.b16 %v660
        %v693 = vunpack.c.h.b16 %v660
        %v694 = vunpack.c.l.b16 %v661
        %v695 = vunpack.c.h.b16 %v661
        %v696 = vunpack.c.l.b16 %v662
        %v697 = vunpack.c.h.b16 %v662
        %v698 = vunpack.c.l.b16 %v663
        %v699 = vunpack.c.h.b16 %v663
        %v700 = vunpack.c.l.b16 %v664
        %v701 = vunpack.c.h.b16 %v664
        %v702 = vunpack.c.l.b16 %v665
        %v703 = vunpack.c.h.b16 %v665
        %v704 = vunpack.c.l.b16 %v666
        %v705 = vunpack.c.h.b16 %v666
        %v706 = vunpack.c.l.b16 %v667
        %v707 = vunpack.c.h.b16 %v667
        %v708 = vunpack.c.l.b16 %v668
        %v709 = vunpack.c.h.b16 %v668
        %v710 = vunpack.c.l.b16 %v669
        %v711 = vunpack.c.h.b16 %v669
        %v712 = vunpack.c.l.b16 %v670
        %v713 = vunpack.c.h.b16 %v670
        %v714 = vunpack.c.l.b16 %v671
        %v715 = vunpack.c.h.b16 %v671
        %v716 = vunpack.c.l.b16 %v672
        %v717 = vunpack.c.h.b16 %v672
        %v718 = vunpack.c.l.b16 %v673
        %v719 = vunpack.c.h.b16 %v673
        %v720 = vunpack.c.l.b16 %v674
        %v721 = vunpack.c.h.b16 %v674
        %v722 = vunpack.c.l.b16 %v675
        %v723 = vunpack.c.h.b16 %v675
        %v724 = vpack.c.b16 %v694, %v692
        %v725 = vpack.c.b16 %v695, %v693
        %v726 = vpack.c.b16 %v698, %v696
        %v727 = vpack.c.b16 %v699, %v697
        %v728 = vpack.c.b16 %v702, %v700
        %v729 = vpack.c.b16 %v703, %v701
        %v730 = vpack.c.b16 %v706, %v704
        %v731 = vpack.c.b16 %v707, %v705
        %v732 = vpack.c.b16 %v710, %v708
        %v733 = vpack.c.b16 %v711, %v709
        %v734 = vpack.c.b16 %v714, %v712
        %v735 = vpack.c.b16 %v715, %v713
        %v736 = vpack.c.b16 %v718, %v716
        %v737 = vpack.c.b16 %v719, %v717
        %v738 = vpack.c.b16 %v722, %v720
        %v739 = vpack.c.b16 %v723, %v721
        %756 = vmatpush.bf16.msra.mxu0 %v738
        %757 = vmatpush.bf16.msra.mxu0 %v736
        %758 = vmatpush.bf16.msra.mxu0 %v734
        %759 = vmatpush.bf16.msra.mxu0 %v732
        %760 = vmatpush.bf16.msra.mxu0 %v730
        %761 = vmatpush.bf16.msra.mxu0 %v728
        %762 = vmatpush.bf16.msra.mxu0 %v726
        %763 = vmatpush.bf16.msra.mxu0 %v724
        %764 = vmatmul.bf16.gmra.mxu0 %v659
        %v765 = vpop.f32.mrf.mxu0
        %v766 = vadd.f32 0.0, %v765
        %v767 = vpop.f32.mrf.mxu0
        %v768 = vadd.f32 0.0, %v767
        %769 = vdwg.mxu0
        %770 = vmatpush.bf16.msra.mxu0 %v739
        %771 = vmatpush.bf16.msra.mxu0 %v737
        %772 = vmatpush.bf16.msra.mxu0 %v735
        %773 = vmatpush.bf16.msra.mxu0 %v733
        %774 = vmatpush.bf16.msra.mxu0 %v731
        %775 = vmatpush.bf16.msra.mxu0 %v729
        %776 = vmatpush.bf16.msra.mxu0 %v727
        %777 = vmatpush.bf16.msra.mxu0 %v725
        %778 = vmatmul.bf16.gmra.mxu0 %v659
        %v779 = vpop.f32.mrf.mxu0
        %v780 = vadd.f32 0.0, %v779
        %v781 = vpop.f32.mrf.mxu0
        %v782 = vadd.f32 0.0, %v781
        %783 = vdwg.mxu0
        %v784 = vxor.u32 %v780, 2147483648
        %v785 = vxor.u32 %v782, 2147483648
        %v786 = vmul.f32 %v784, 1.442695
        %v787 = vpow.pop %v786
        %v788 = vmul.f32 %v785, 1.442695
        %v789 = vpow.pop %v788
        %v790 = vadd.f32 %v787, 1.0
        %v791 = vadd.f32 %v789, 1.0
        %v792 = vrcp.pop %v790
        %v793 = vmul.f32 %v790, %v792
        %v794 = vsub.f32 1.0, %v793
        %v795 = vmul.f32 %v792, %v794
        %v796 = vadd.f32 %v792, %v795
        %vm797 = vweird.f32 %v790
        %vm798 = vweird.f32 %v792
        %vm799 = vmor %vm797, %vm798
        %v800 = vsel %vm799, %v792, %v796
        %v801 = vand.u32 2147483647, %v790
        %vm802 = vcmp.eq.f32.partialorder %v801, 8.507059e+37
        %v803 = vand.u32 %v790, 2147483648
        %v804 = vor.u32 1.1754944e-38, %v803
        %v805 = vsel %vm802, %v804, %v800
        %v806 = vmul.f32 1.0, %v805
        %v807 = vrcp.pop %v791
        %v808 = vmul.f32 %v791, %v807
        %v809 = vsub.f32 1.0, %v808
        %v810 = vmul.f32 %v807, %v809
        %v811 = vadd.f32 %v807, %v810
        %vm812 = vweird.f32 %v791
        %vm813 = vweird.f32 %v807
        %vm814 = vmor %vm812, %vm813
        %v815 = vsel %vm814, %v807, %v811
        %v816 = vand.u32 2147483647, %v791
        %vm817 = vcmp.eq.f32.partialorder %v816, 8.507059e+37
        %v818 = vand.u32 %v791, 2147483648
        %v819 = vor.u32 1.1754944e-38, %v818
        %v820 = vsel %vm817, %v819, %v815
        %v821 = vmul.f32 1.0, %v820
        %v822 = vmul.f32 %v766, %v806
        %v823 = vmul.f32 %v768, %v821
        %824 = vst [vmem:[#allocation2 + $0x10] sm:$0xff] %v822
        %825 = vst [vmem:[#allocation2 + $0x18] sm:$0xff] %v823
        %p826 = scmp.eq.s32.totalorder %s38, 0
        // Predicated region
        $region93: #{conv_module_forward.1} parent=59 // pred_check
          %p827 = pneg %p826
        $region94: #{conv_module_forward.1} parent=59 // pred_check_branch
          %829 = sbr.rel (%p827) target = $region96
        $region95: #{conv_module_forward.1} parent=59 // pred_region
          %830 = vst [vmem:[#allocation2] sm:$0xff] 0.0
          %831 = vst [vmem:[#allocation2 + $0x8] sm:$0xff] 0.0
        $region96: #{conv_module_forward.1} parent=59 // pred_fallthru
          _
        %p832 = scmp.gt.s32.totalorder %s38, 0
        // Predicated region
        $region97: #{conv_module_forward.1} parent=59 // pred_check
          %p833 = pneg %p832
        $region98: #{conv_module_forward.1} parent=59 // pred_check_branch
          %835 = sbr.rel (%p833) target = $region100
        $region99: #{conv_module_forward.1} parent=59 // pred_region
          %v836 = vld [vmem:[%s499] sm:$0xff]
          %v837 = vld [vmem:[%s499 + $0x8] sm:$0xff]
          %838 = vadd.xlane.f32.xlu0 %v836
          %v839 = vpop.xlane.xlu0 %838
          %840 = vadd.xlane.f32.xlu0 %v837
          %v841 = vpop.xlane.xlu0 %840
          %v842 = vmul.f32 %v839, %v604
          %v843 = vmul.f32 %v841, %v604
          %v844 = vmul.f32 %v836, %v836
          %v845 = vmul.f32 %v837, %v837
          %846 = vadd.xlane.f32.xlu0 %v844
          %v847 = vpop.xlane.xlu0 %846
          %848 = vadd.xlane.f32.xlu0 %v845
          %v849 = vpop.xlane.xlu0 %848
          %v850 = vmul.f32 %v847, %v604
          %v851 = vmul.f32 %v849, %v604
          %v852 = vmul.f32 %v842, %v842
          %v853 = vmul.f32 %v843, %v843
          %v854 = vsub.f32 %v850, %v852
          %v855 = vsub.f32 %v851, %v853
          %v856 = vmax.f32 %v854, 0.0
          %v857 = vmax.f32 %v855, 0.0
          %v858 = vsub.f32 %v836, %v842
          %v859 = vsub.f32 %v837, %v843
          %v860 = vadd.f32 %v856, 1e-05
          %v861 = vadd.f32 %v857, 1e-05
          %v862 = vrsqrt.pop %v860
          %v863 = vmul.f32 %v862, %v860
          %v864 = vmul.f32 %v863, %v862
          %v865 = vmul.f32 0.5, %v864
          %v866 = vsub.f32 1.5, %v865
          %v867 = vmul.f32 %v862, %v866
          %vm868 = vweird.f32 %v860
          %vm869 = vweird.f32 %v862
          %vm870 = vmor %vm868, %vm869
          %v871 = vsel %vm870, %v862, %v867
          %v872 = vrsqrt.pop %v861
          %v873 = vmul.f32 %v872, %v861
          %v874 = vmul.f32 %v873, %v872
          %v875 = vmul.f32 0.5, %v874
          %v876 = vsub.f32 1.5, %v875
          %v877 = vmul.f32 %v872, %v876
          %vm878 = vweird.f32 %v861
          %vm879 = vweird.f32 %v872
          %vm880 = vmor %vm878, %vm879
          %v881 = vsel %vm880, %v872, %v877
          %v882 = vmul.f32 %v858, %v871
          %v883 = vmul.f32 %v859, %v881
          %v884 = vld [vmem:[%s3] sm:$0x1]
          %v886 = vperm.slane %v884, 0
          %v888 = vmul.f32 %v882, %v886
          %v889 = vmul.f32 %v883, %v886
          %v890 = vld [vmem:[%s4] sm:$0x1]
          %v892 = vperm.slane %v890, 0
          %v894 = vadd.f32 %v888, %v892
          %v895 = vadd.f32 %v889, %v892
          %v896 = vpack.c.bf16 %v895, %v894
          %v897 = vld [vmem:[#allocation9] sm:$0xff]
          %v898 = vld [vmem:[#allocation9 + $0x8] sm:$0xff]
          %v899 = vld [vmem:[#allocation9 + $0x10] sm:$0xff]
          %v900 = vld [vmem:[#allocation9 + $0x18] sm:$0xff]
          %v901 = vld [vmem:[#allocation9 + $0x20] sm:$0xff]
          %v902 = vld [vmem:[#allocation9 + $0x28] sm:$0xff]
          %v903 = vld [vmem:[#allocation9 + $0x30] sm:$0xff]
          %v904 = vld [vmem:[#allocation9 + $0x38] sm:$0xff]
          %v905 = vld [vmem:[#allocation9 + $0x40] sm:$0xff]
          %v906 = vld [vmem:[#allocation9 + $0x48] sm:$0xff]
          %v907 = vld [vmem:[#allocation9 + $0x50] sm:$0xff]
          %v908 = vld [vmem:[#allocation9 + $0x58] sm:$0xff]
          %v909 = vld [vmem:[#allocation9 + $0x60] sm:$0xff]
          %v910 = vld [vmem:[#allocation9 + $0x68] sm:$0xff]
          %v911 = vld [vmem:[#allocation9 + $0x70] sm:$0xff]
          %v912 = vld [vmem:[#allocation9 + $0x78] sm:$0xff]
          %v929 = vunpack.c.l.b16 %v897
          %v930 = vunpack.c.h.b16 %v897
          %v931 = vunpack.c.l.b16 %v898
          %v932 = vunpack.c.h.b16 %v898
          %v933 = vunpack.c.l.b16 %v899
          %v934 = vunpack.c.h.b16 %v899
          %v935 = vunpack.c.l.b16 %v900
          %v936 = vunpack.c.h.b16 %v900
          %v937 = vunpack.c.l.b16 %v901
          %v938 = vunpack.c.h.b16 %v901
          %v939 = vunpack.c.l.b16 %v902
          %v940 = vunpack.c.h.b16 %v902
          %v941 = vunpack.c.l.b16 %v903
          %v942 = vunpack.c.h.b16 %v903
          %v943 = vunpack.c.l.b16 %v904
          %v944 = vunpack.c.h.b16 %v904
          %v945 = vunpack.c.l.b16 %v905
          %v946 = vunpack.c.h.b16 %v905
          %v947 = vunpack.c.l.b16 %v906
          %v948 = vunpack.c.h.b16 %v906
          %v949 = vunpack.c.l.b16 %v907
          %v950 = vunpack.c.h.b16 %v907
          %v951 = vunpack.c.l.b16 %v908
          %v952 = vunpack.c.h.b16 %v908
          %v953 = vunpack.c.l.b16 %v909
          %v954 = vunpack.c.h.b16 %v909
          %v955 = vunpack.c.l.b16 %v910
          %v956 = vunpack.c.h.b16 %v910
          %v957 = vunpack.c.l.b16 %v911
          %v958 = vunpack.c.h.b16 %v911
          %v959 = vunpack.c.l.b16 %v912
          %v960 = vunpack.c.h.b16 %v912
          %v961 = vpack.c.b16 %v931, %v929
          %v962 = vpack.c.b16 %v932, %v930
          %v963 = vpack.c.b16 %v935, %v933
          %v964 = vpack.c.b16 %v936, %v934
          %v965 = vpack.c.b16 %v939, %v937
          %v966 = vpack.c.b16 %v940, %v938
          %v967 = vpack.c.b16 %v943, %v941
          %v968 = vpack.c.b16 %v944, %v942
          %v969 = vpack.c.b16 %v947, %v945
          %v970 = vpack.c.b16 %v948, %v946
          %v971 = vpack.c.b16 %v951, %v949
          %v972 = vpack.c.b16 %v952, %v950
          %v973 = vpack.c.b16 %v955, %v953
          %v974 = vpack.c.b16 %v956, %v954
          %v975 = vpack.c.b16 %v959, %v957
          %v976 = vpack.c.b16 %v960, %v958
          %993 = vmatpush.bf16.msra.mxu0 %v975
          %994 = vmatpush.bf16.msra.mxu0 %v973
          %995 = vmatpush.bf16.msra.mxu0 %v971
          %996 = vmatpush.bf16.msra.mxu0 %v969
          %997 = vmatpush.bf16.msra.mxu0 %v967
          %998 = vmatpush.bf16.msra.mxu0 %v965
          %999 = vmatpush.bf16.msra.mxu0 %v963
          %1000 = vmatpush.bf16.msra.mxu0 %v961
          %1001 = vmatmul.bf16.gmra.mxu0 %v896
          %v1002 = vpop.f32.mrf.mxu0
          %v1003 = vadd.f32 0.0, %v1002
          %v1004 = vpop.f32.mrf.mxu0
          %v1005 = vadd.f32 0.0, %v1004
          %1006 = vdwg.mxu0
          %1007 = vmatpush.bf16.msra.mxu0 %v976
          %1008 = vmatpush.bf16.msra.mxu0 %v974
          %1009 = vmatpush.bf16.msra.mxu0 %v972
          %1010 = vmatpush.bf16.msra.mxu0 %v970
          %1011 = vmatpush.bf16.msra.mxu0 %v968
          %1012 = vmatpush.bf16.msra.mxu0 %v966
          %1013 = vmatpush.bf16.msra.mxu0 %v964
          %1014 = vmatpush.bf16.msra.mxu0 %v962
          %1015 = vmatmul.bf16.gmra.mxu0 %v896
          %v1016 = vpop.f32.mrf.mxu0
          %v1017 = vadd.f32 0.0, %v1016
          %v1018 = vpop.f32.mrf.mxu0
          %v1019 = vadd.f32 0.0, %v1018
          %1020 = vdwg.mxu0
          %v1021 = vxor.u32 %v1017, 2147483648
          %v1022 = vxor.u32 %v1019, 2147483648
          %v1023 = vmul.f32 %v1021, 1.442695
          %v1024 = vpow.pop %v1023
          %v1025 = vmul.f32 %v1022, 1.442695
          %v1026 = vpow.pop %v1025
          %v1027 = vadd.f32 %v1024, 1.0
          %v1028 = vadd.f32 %v1026, 1.0
          %v1029 = vrcp.pop %v1027
          %v1030 = vmul.f32 %v1027, %v1029
          %v1031 = vsub.f32 1.0, %v1030
          %v1032 = vmul.f32 %v1029, %v1031
          %v1033 = vadd.f32 %v1029, %v1032
          %vm1034 = vweird.f32 %v1027
          %vm1035 = vweird.f32 %v1029
          %vm1036 = vmor %vm1034, %vm1035
          %v1037 = vsel %vm1036, %v1029, %v1033
          %v1038 = vand.u32 2147483647, %v1027
          %vm1039 = vcmp.eq.f32.partialorder %v1038, 8.507059e+37
          %v1040 = vand.u32 %v1027, 2147483648
          %v1041 = vor.u32 1.1754944e-38, %v1040
          %v1042 = vsel %vm1039, %v1041, %v1037
          %v1043 = vmul.f32 1.0, %v1042
          %v1044 = vrcp.pop %v1028
          %v1045 = vmul.f32 %v1028, %v1044
          %v1046 = vsub.f32 1.0, %v1045
          %v1047 = vmul.f32 %v1044, %v1046
          %v1048 = vadd.f32 %v1044, %v1047
          %vm1049 = vweird.f32 %v1028
          %vm1050 = vweird.f32 %v1044
          %vm1051 = vmor %vm1049, %vm1050
          %v1052 = vsel %vm1051, %v1044, %v1048
          %v1053 = vand.u32 2147483647, %v1028
          %vm1054 = vcmp.eq.f32.partialorder %v1053, 8.507059e+37
          %v1055 = vand.u32 %v1028, 2147483648
          %v1056 = vor.u32 1.1754944e-38, %v1055
          %v1057 = vsel %vm1054, %v1056, %v1052
          %v1058 = vmul.f32 1.0, %v1057
          %v1059 = vmul.f32 %v1003, %v1043
          %v1060 = vmul.f32 %v1005, %v1058
          %1061 = vst [vmem:[#allocation2] sm:$0xff] %v1059
          %1062 = vst [vmem:[#allocation2 + $0x8] sm:$0xff] %v1060
        $region100: #{conv_module_forward.1} parent=59 // pred_fallthru
          _
        %p1063 = scmp.eq.s32.totalorder %s38, 3
        // Predicated region
        $region101: #{conv_module_forward.1} parent=59 // pred_check
          %p1064 = pneg %p1063
        $region102: #{conv_module_forward.1} parent=59 // pred_check_branch
          %1066 = sbr.rel (%p1064) target = $region104
        $region103: #{conv_module_forward.1} parent=59 // pred_region
          %1067 = vst [vmem:[#allocation2 + $0x20] sm:$0xff] 0.0
          %1068 = vst [vmem:[#allocation2 + $0x28] sm:$0xff] 0.0
        $region104: #{conv_module_forward.1} parent=59 // pred_fallthru
          _
        %p1069 = scmp.lt.s32.totalorder %s38, 3
        // Predicated region
        $region105: #{conv_module_forward.1} parent=59 // pred_check
          %p1070 = pneg %p1069
        $region106: #{conv_module_forward.1} parent=59 // pred_check_branch
          %1072 = sbr.rel (%p1070) target = $region108
        $region107: #{conv_module_forward.1} parent=59 // pred_region
          %v1073 = vld [vmem:[%s509] sm:$0xff]
          %v1074 = vld [vmem:[%s509 + $0x8] sm:$0xff]
          %1075 = vadd.xlane.f32.xlu0 %v1073
          %v1076 = vpop.xlane.xlu0 %1075
          %1077 = vadd.xlane.f32.xlu0 %v1074
          %v1078 = vpop.xlane.xlu0 %1077
          %v1079 = vmul.f32 %v1076, %v604
          %v1080 = vmul.f32 %v1078, %v604
          %v1081 = vmul.f32 %v1073, %v1073
          %v1082 = vmul.f32 %v1074, %v1074
          %1083 = vadd.xlane.f32.xlu0 %v1081
          %v1084 = vpop.xlane.xlu0 %1083
          %1085 = vadd.xlane.f32.xlu0 %v1082
          %v1086 = vpop.xlane.xlu0 %1085
          %v1087 = vmul.f32 %v1084, %v604
          %v1088 = vmul.f32 %v1086, %v604
          %v1089 = vmul.f32 %v1079, %v1079
          %v1090 = vmul.f32 %v1080, %v1080
          %v1091 = vsub.f32 %v1087, %v1089
          %v1092 = vsub.f32 %v1088, %v1090
          %v1093 = vmax.f32 %v1091, 0.0
          %v1094 = vmax.f32 %v1092, 0.0
          %v1095 = vsub.f32 %v1073, %v1079
          %v1096 = vsub.f32 %v1074, %v1080
          %v1097 = vadd.f32 %v1093, 1e-05
          %v1098 = vadd.f32 %v1094, 1e-05
          %v1099 = vrsqrt.pop %v1097
          %v1100 = vmul.f32 %v1099, %v1097
          %v1101 = vmul.f32 %v1100, %v1099
          %v1102 = vmul.f32 0.5, %v1101
          %v1103 = vsub.f32 1.5, %v1102
          %v1104 = vmul.f32 %v1099, %v1103
          %vm1105 = vweird.f32 %v1097
          %vm1106 = vweird.f32 %v1099
          %vm1107 = vmor %vm1105, %vm1106
          %v1108 = vsel %vm1107, %v1099, %v1104
          %v1109 = vrsqrt.pop %v1098
          %v1110 = vmul.f32 %v1109, %v1098
          %v1111 = vmul.f32 %v1110, %v1109
          %v1112 = vmul.f32 0.5, %v1111
          %v1113 = vsub.f32 1.5, %v1112
          %v1114 = vmul.f32 %v1109, %v1113
          %vm1115 = vweird.f32 %v1098
          %vm1116 = vweird.f32 %v1109
          %vm1117 = vmor %vm1115, %vm1116
          %v1118 = vsel %vm1117, %v1109, %v1114
          %v1119 = vmul.f32 %v1095, %v1108
          %v1120 = vmul.f32 %v1096, %v1118
          %v1121 = vld [vmem:[%s3] sm:$0x1]
          %v1123 = vperm.slane %v1121, 0
          %v1125 = vmul.f32 %v1119, %v1123
          %v1126 = vmul.f32 %v1120, %v1123
          %v1127 = vld [vmem:[%s4] sm:$0x1]
          %v1129 = vperm.slane %v1127, 0
          %v1131 = vadd.f32 %v1125, %v1129
          %v1132 = vadd.f32 %v1126, %v1129
          %v1133 = vpack.c.bf16 %v1132, %v1131
          %v1134 = vld [vmem:[#allocation9] sm:$0xff]
          %v1135 = vld [vmem:[#allocation9 + $0x8] sm:$0xff]
          %v1136 = vld [vmem:[#allocation9 + $0x10] sm:$0xff]
          %v1137 = vld [vmem:[#allocation9 + $0x18] sm:$0xff]
          %v1138 = vld [vmem:[#allocation9 + $0x20] sm:$0xff]
          %v1139 = vld [vmem:[#allocation9 + $0x28] sm:$0xff]
          %v1140 = vld [vmem:[#allocation9 + $0x30] sm:$0xff]
          %v1141 = vld [vmem:[#allocation9 + $0x38] sm:$0xff]
          %v1142 = vld [vmem:[#allocation9 + $0x40] sm:$0xff]
          %v1143 = vld [vmem:[#allocation9 + $0x48] sm:$0xff]
          %v1144 = vld [vmem:[#allocation9 + $0x50] sm:$0xff]
          %v1145 = vld [vmem:[#allocation9 + $0x58] sm:$0xff]
          %v1146 = vld [vmem:[#allocation9 + $0x60] sm:$0xff]
          %v1147 = vld [vmem:[#allocation9 + $0x68] sm:$0xff]
          %v1148 = vld [vmem:[#allocation9 + $0x70] sm:$0xff]
          %v1149 = vld [vmem:[#allocation9 + $0x78] sm:$0xff]
          %v1166 = vunpack.c.l.b16 %v1134
          %v1167 = vunpack.c.h.b16 %v1134
          %v1168 = vunpack.c.l.b16 %v1135
          %v1169 = vunpack.c.h.b16 %v1135
          %v1170 = vunpack.c.l.b16 %v1136
          %v1171 = vunpack.c.h.b16 %v1136
          %v1172 = vunpack.c.l.b16 %v1137
          %v1173 = vunpack.c.h.b16 %v1137
          %v1174 = vunpack.c.l.b16 %v1138
          %v1175 = vunpack.c.h.b16 %v1138
          %v1176 = vunpack.c.l.b16 %v1139
          %v1177 = vunpack.c.h.b16 %v1139
          %v1178 = vunpack.c.l.b16 %v1140
          %v1179 = vunpack.c.h.b16 %v1140
          %v1180 = vunpack.c.l.b16 %v1141
          %v1181 = vunpack.c.h.b16 %v1141
          %v1182 = vunpack.c.l.b16 %v1142
          %v1183 = vunpack.c.h.b16 %v1142
          %v1184 = vunpack.c.l.b16 %v1143
          %v1185 = vunpack.c.h.b16 %v1143
          %v1186 = vunpack.c.l.b16 %v1144
          %v1187 = vunpack.c.h.b16 %v1144
          %v1188 = vunpack.c.l.b16 %v1145
          %v1189 = vunpack.c.h.b16 %v1145
          %v1190 = vunpack.c.l.b16 %v1146
          %v1191 = vunpack.c.h.b16 %v1146
          %v1192 = vunpack.c.l.b16 %v1147
          %v1193 = vunpack.c.h.b16 %v1147
          %v1194 = vunpack.c.l.b16 %v1148
          %v1195 = vunpack.c.h.b16 %v1148
          %v1196 = vunpack.c.l.b16 %v1149
          %v1197 = vunpack.c.h.b16 %v1149
          %v1198 = vpack.c.b16 %v1168, %v1166
          %v1199 = vpack.c.b16 %v1169, %v1167
          %v1200 = vpack.c.b16 %v1172, %v1170
          %v1201 = vpack.c.b16 %v1173, %v1171
          %v1202 = vpack.c.b16 %v1176, %v1174
          %v1203 = vpack.c.b16 %v1177, %v1175
          %v1204 = vpack.c.b16 %v1180, %v1178
          %v1205 = vpack.c.b16 %v1181, %v1179
          %v1206 = vpack.c.b16 %v1184, %v1182
          %v1207 = vpack.c.b16 %v1185, %v1183
          %v1208 = vpack.c.b16 %v1188, %v1186
          %v1209 = vpack.c.b16 %v1189, %v1187
          %v1210 = vpack.c.b16 %v1192, %v1190
          %v1211 = vpack.c.b16 %v1193, %v1191
          %v1212 = vpack.c.b16 %v1196, %v1194
          %v1213 = vpack.c.b16 %v1197, %v1195
          %1230 = vmatpush.bf16.msra.mxu0 %v1212
          %1231 = vmatpush.bf16.msra.mxu0 %v1210
          %1232 = vmatpush.bf16.msra.mxu0 %v1208
          %1233 = vmatpush.bf16.msra.mxu0 %v1206
          %1234 = vmatpush.bf16.msra.mxu0 %v1204
          %1235 = vmatpush.bf16.msra.mxu0 %v1202
          %1236 = vmatpush.bf16.msra.mxu0 %v1200
          %1237 = vmatpush.bf16.msra.mxu0 %v1198
          %1238 = vmatmul.bf16.gmra.mxu0 %v1133
          %v1239 = vpop.f32.mrf.mxu0
          %v1240 = vadd.f32 0.0, %v1239
          %v1241 = vpop.f32.mrf.mxu0
          %v1242 = vadd.f32 0.0, %v1241
          %1243 = vdwg.mxu0
          %1244 = vmatpush.bf16.msra.mxu0 %v1213
          %1245 = vmatpush.bf16.msra.mxu0 %v1211
          %1246 = vmatpush.bf16.msra.mxu0 %v1209
          %1247 = vmatpush.bf16.msra.mxu0 %v1207
          %1248 = vmatpush.bf16.msra.mxu0 %v1205
          %1249 = vmatpush.bf16.msra.mxu0 %v1203
          %1250 = vmatpush.bf16.msra.mxu0 %v1201
          %1251 = vmatpush.bf16.msra.mxu0 %v1199
          %1252 = vmatmul.bf16.gmra.mxu0 %v1133
          %v1253 = vpop.f32.mrf.mxu0
          %v1254 = vadd.f32 0.0, %v1253
          %v1255 = vpop.f32.mrf.mxu0
          %v1256 = vadd.f32 0.0, %v1255
          %1257 = vdwg.mxu0
          %v1258 = vxor.u32 %v1254, 2147483648
          %v1259 = vxor.u32 %v1256, 2147483648
          %v1260 = vmul.f32 %v1258, 1.442695
          %v1261 = vpow.pop %v1260
          %v1262 = vmul.f32 %v1259, 1.442695
          %v1263 = vpow.pop %v1262
          %v1264 = vadd.f32 %v1261, 1.0
          %v1265 = vadd.f32 %v1263, 1.0
          %v1266 = vrcp.pop %v1264
          %v1267 = vmul.f32 %v1264, %v1266
          %v1268 = vsub.f32 1.0, %v1267
          %v1269 = vmul.f32 %v1266, %v1268
          %v1270 = vadd.f32 %v1266, %v1269
          %vm1271 = vweird.f32 %v1264
          %vm1272 = vweird.f32 %v1266
          %vm1273 = vmor %vm1271, %vm1272
          %v1274 = vsel %vm1273, %v1266, %v1270
          %v1275 = vand.u32 2147483647, %v1264
          %vm1276 = vcmp.eq.f32.partialorder %v1275, 8.507059e+37
          %v1277 = vand.u32 %v1264, 2147483648
          %v1278 = vor.u32 1.1754944e-38, %v1277
          %v1279 = vsel %vm1276, %v1278, %v1274
          %v1280 = vmul.f32 1.0, %v1279
          %v1281 = vrcp.pop %v1265
          %v1282 = vmul.f32 %v1265, %v1281
          %v1283 = vsub.f32 1.0, %v1282
          %v1284 = vmul.f32 %v1281, %v1283
          %v1285 = vadd.f32 %v1281, %v1284
          %vm1286 = vweird.f32 %v1265
          %vm1287 = vweird.f32 %v1281
          %vm1288 = vmor %vm1286, %vm1287
          %v1289 = vsel %vm1288, %v1281, %v1285
          %v1290 = vand.u32 2147483647, %v1265
          %vm1291 = vcmp.eq.f32.partialorder %v1290, 8.507059e+37
          %v1292 = vand.u32 %v1265, 2147483648
          %v1293 = vor.u32 1.1754944e-38, %v1292
          %v1294 = vsel %vm1291, %v1293, %v1289
          %v1295 = vmul.f32 1.0, %v1294
          %v1296 = vmul.f32 %v1240, %v1280
          %v1297 = vmul.f32 %v1242, %v1295
          %1298 = vst [vmem:[#allocation2 + $0x20] sm:$0xff] %v1296
          %1299 = vst [vmem:[#allocation2 + $0x28] sm:$0xff] %v1297
        $region108: #{conv_module_forward.1} parent=59 // pred_fallthru
          _
        %v1300 = vld [vmem:[#allocation11] sm:$0x7f]
        %v1301 = vld [vmem:[#allocation2 + $0xd] sm:$0xff]
        %v1302 = vld [vmem:[#allocation2 + $0x15] sm:$0xff]
        %v1303 = vperm.slane %v1300, 0
        %v1304 = vmul.f32 %v1301, %v1303
        %v1305 = vmul.f32 %v1302, %v1303
        %v1306 = vadd.f32 %v1304, 0.0
        %v1307 = vadd.f32 %v1305, 0.0
        %v1308 = vld [vmem:[#allocation2 + $0xe] sm:$0xff]
        %v1309 = vld [vmem:[#allocation2 + $0x16] sm:$0xff]
        %v1310 = vperm.slane %v1300, 1
        %v1311 = vmul.f32 %v1308, %v1310
        %v1312 = vmul.f32 %v1309, %v1310
        %v1313 = vadd.f32 %v1306, %v1311
        %v1314 = vadd.f32 %v1307, %v1312
        %v1315 = vld [vmem:[#allocation2 + $0xf] sm:$0xff]
        %v1316 = vld [vmem:[#allocation2 + $0x17] sm:$0xff]
        %v1317 = vperm.slane %v1300, 2
        %v1318 = vmul.f32 %v1315, %v1317
        %v1319 = vmul.f32 %v1316, %v1317
        %v1320 = vadd.f32 %v1313, %v1318
        %v1321 = vadd.f32 %v1314, %v1319
        %v1322 = vld [vmem:[#allocation2 + $0x10] sm:$0xff]
        %v1323 = vld [vmem:[#allocation2 + $0x18] sm:$0xff]
        %v1324 = vperm.slane %v1300, 3
        %v1325 = vmul.f32 %v1322, %v1324
        %v1326 = vmul.f32 %v1323, %v1324
        %v1327 = vadd.f32 %v1320, %v1325
        %v1328 = vadd.f32 %v1321, %v1326
        %v1329 = vld [vmem:[#allocation2 + $0x11] sm:$0xff]
        %v1330 = vld [vmem:[#allocation2 + $0x19] sm:$0xff]
        %v1331 = vperm.slane %v1300, 4
        %v1332 = vmul.f32 %v1329, %v1331
        %v1333 = vmul.f32 %v1330, %v1331
        %v1334 = vadd.f32 %v1327, %v1332
        %v1335 = vadd.f32 %v1328, %v1333
        %v1336 = vld [vmem:[#allocation2 + $0x12] sm:$0xff]
        %v1337 = vld [vmem:[#allocation2 + $0x1a] sm:$0xff]
        %v1338 = vperm.slane %v1300, 5
        %v1339 = vmul.f32 %v1336, %v1338
        %v1340 = vmul.f32 %v1337, %v1338
        %v1341 = vadd.f32 %v1334, %v1339
        %v1342 = vadd.f32 %v1335, %v1340
        %v1343 = vld [vmem:[#allocation2 + $0x13] sm:$0xff]
        %v1344 = vld [vmem:[#allocation2 + $0x1b] sm:$0xff]
        %v1345 = vperm.slane %v1300, 6
        %v1346 = vmul.f32 %v1343, %v1345
        %v1347 = vmul.f32 %v1344, %v1345
        %v1348 = vadd.f32 %v1341, %v1346
        %v1349 = vadd.f32 %v1342, %v1347
        %v1350 = vld [vmem:[#allocation12] sm:$0x1]
        %v1352 = vperm.slane %v1350, 0
        %v1354 = vmul.f32 %v1348, %v1352
        %v1355 = vmul.f32 %v1349, %v1352
        %v1356 = vld [vmem:[#allocation14] sm:$0x1]
        %v1358 = vperm.slane %v1356, 0
        %v1360 = vadd.f32 %v1354, %v1358
        %v1361 = vadd.f32 %v1355, %v1358
        %v1362 = vxor.u32 %v1360, 2147483648
        %v1363 = vxor.u32 %v1361, 2147483648
        %v1364 = vmul.f32 %v1362, 1.442695
        %v1365 = vpow.pop %v1364
        %v1366 = vmul.f32 %v1363, 1.442695
        %v1367 = vpow.pop %v1366
        %v1368 = vadd.f32 %v1365, 1.0
        %v1369 = vadd.f32 %v1367, 1.0
        %v1370 = vrcp.pop %v1368
        %v1371 = vmul.f32 %v1368, %v1370
        %v1372 = vsub.f32 1.0, %v1371
        %v1373 = vmul.f32 %v1370, %v1372
        %v1374 = vadd.f32 %v1370, %v1373
        %vm1375 = vweird.f32 %v1368
        %vm1376 = vweird.f32 %v1370
        %vm1377 = vmor %vm1375, %vm1376
        %v1378 = vsel %vm1377, %v1370, %v1374
        %v1379 = vand.u32 2147483647, %v1368
        %vm1380 = vcmp.eq.f32.partialorder %v1379, 8.507059e+37
        %v1381 = vand.u32 %v1368, 2147483648
        %v1382 = vor.u32 1.1754944e-38, %v1381
        %v1383 = vsel %vm1380, %v1382, %v1378
        %v1384 = vmul.f32 1.0, %v1383
        %v1385 = vrcp.pop %v1369
        %v1386 = vmul.f32 %v1369, %v1385
        %v1387 = vsub.f32 1.0, %v1386
        %v1388 = vmul.f32 %v1385, %v1387
        %v1389 = vadd.f32 %v1385, %v1388
        %vm1390 = vweird.f32 %v1369
        %vm1391 = vweird.f32 %v1385
        %vm1392 = vmor %vm1390, %vm1391
        %v1393 = vsel %vm1392, %v1385, %v1389
        %v1394 = vand.u32 2147483647, %v1369
        %vm1395 = vcmp.eq.f32.partialorder %v1394, 8.507059e+37
        %v1396 = vand.u32 %v1369, 2147483648
        %v1397 = vor.u32 1.1754944e-38, %v1396
        %v1398 = vsel %vm1395, %v1397, %v1393
        %v1399 = vmul.f32 1.0, %v1398
        %v1400 = vmul.f32 %v1360, %v1384
        %v1401 = vmul.f32 %v1361, %v1399
        %v1402 = vpack.c.bf16 %v1401, %v1400
        %v1403 = vld [vmem:[#allocation15] sm:$0xf]
        %v1404 = vld [vmem:[#allocation15 + $0x4] sm:$0xf]
        %v1405 = vld [vmem:[#allocation15 + $0x8] sm:$0xf]
        %v1406 = vld [vmem:[#allocation15 + $0xc] sm:$0xf]
        %v1407 = vld [vmem:[#allocation15 + $0x10] sm:$0xf]
        %v1408 = vld [vmem:[#allocation15 + $0x14] sm:$0xf]
        %v1409 = vld [vmem:[#allocation15 + $0x18] sm:$0xf]
        %v1410 = vld [vmem:[#allocation15 + $0x1c] sm:$0xf]
        %v1411 = vld [vmem:[#allocation15 + $0x20] sm:$0xf]
        %v1412 = vld [vmem:[#allocation15 + $0x24] sm:$0xf]
        %v1413 = vld [vmem:[#allocation15 + $0x28] sm:$0xf]
        %v1414 = vld [vmem:[#allocation15 + $0x2c] sm:$0xf]
        %v1415 = vld [vmem:[#allocation15 + $0x30] sm:$0xf]
        %v1416 = vld [vmem:[#allocation15 + $0x34] sm:$0xf]
        %v1417 = vld [vmem:[#allocation15 + $0x38] sm:$0xf]
        %v1418 = vld [vmem:[#allocation15 + $0x3c] sm:$0xf]
        %v1435 = vunpack.c.l.b16 %v1403
        %v1436 = vunpack.c.l.b16 %v1404
        %v1437 = vunpack.c.l.b16 %v1405
        %v1438 = vunpack.c.l.b16 %v1406
        %v1439 = vunpack.c.l.b16 %v1407
        %v1440 = vunpack.c.l.b16 %v1408
        %v1441 = vunpack.c.l.b16 %v1409
        %v1442 = vunpack.c.l.b16 %v1410
        %v1443 = vunpack.c.l.b16 %v1411
        %v1444 = vunpack.c.l.b16 %v1412
        %v1445 = vunpack.c.l.b16 %v1413
        %v1446 = vunpack.c.l.b16 %v1414
        %v1447 = vunpack.c.l.b16 %v1415
        %v1448 = vunpack.c.l.b16 %v1416
        %v1449 = vunpack.c.l.b16 %v1417
        %v1450 = vunpack.c.l.b16 %v1418
        %v1451 = vpack.c.b16 %v1436, %v1435
        %v1452 = vpack.c.b16 %v1438, %v1437
        %v1453 = vpack.c.b16 %v1440, %v1439
        %v1454 = vpack.c.b16 %v1442, %v1441
        %v1455 = vpack.c.b16 %v1444, %v1443
        %v1456 = vpack.c.b16 %v1446, %v1445
        %v1457 = vpack.c.b16 %v1448, %v1447
        %v1458 = vpack.c.b16 %v1450, %v1449
        %1467 = vmatpush.bf16.msra.mxu0 %v1458
        %1468 = vmatpush.bf16.msra.mxu0 %v1457
        %1469 = vmatpush.bf16.msra.mxu0 %v1456
        %1470 = vmatpush.bf16.msra.mxu0 %v1455
        %1471 = vmatpush.bf16.msra.mxu0 %v1454
        %1472 = vmatpush.bf16.msra.mxu0 %v1453
        %1473 = vmatpush.bf16.msra.mxu0 %v1452
        %1474 = vmatpush.bf16.msra.mxu0 %v1451
        %1475 = vmatmul.bf16.gmra.mxu0 %v1402
        %v1476 = vpop.f32.mrf.mxu0
        %v1477 = vadd.f32 0.0, %v1476
        %v1478 = vpop.f32.mrf.mxu0
        %v1479 = vadd.f32 0.0, %v1478
        %1480 = vdwg.mxu0
        %1481 = vst [vmem:[%s581] sm:$0xff] %v1477
        %1482 = vst [vmem:[%s581 + $0x8] sm:$0xff] %v1479
        %s1483 = sand.u32 %s298, 1
        %s1484 = scalar_lea.sflag [#allocation5], %s1483
        %s1485 = sand.u32 %s298, 1
        %s1486 = smul.addr %s1485, 16
        %s1487 = scalar_lea.vmem [#allocation17], %s1486
        // Predicated region
        $region109: #{conv_module_forward.1} parent=59 // pred_check
          %p1488 = pneg %p308
        $region110: #{conv_module_forward.1} parent=59 // pred_check_branch
          %1490 = sbr.rel (%p1488) target = $region112
        $region111: #{conv_module_forward.1} parent=59 // pred_region
          %s1491 = smul.u32 2, %s38
          %1493 = vsyncadd %s1484, 0
          %s1494 = smul.addr %s37, 8
          %s1495 = sadd.s32 %s1491, %s1494
          %s1496 = smul.addr %s1495, 8
          %s1497 = scalar_lea.hbm %s10, %s1496
          %s1498 = sshll.u32 %s1487, 4
          %s1499 = int_to_ptr.vmem [resolvable:$true] %s1498
          %s1500 = sshll.u32 %s1497, 4
          %s1501 = int_to_ptr.hbm [resolvable:$true] %s1500
          %1506 = dma.vmem_to_hbm [thread:$0]  %s1499, 256, %s1501, %s1484, 128, 128, 8
        $region112: #{conv_module_forward.1} parent=59 // pred_fallthru
          _
      $region60: #{conv_module_forward.1} parent=5 // pred_fallthru
        _
      %p1507 = scmp.le.s32.totalorder 2, %s28
      // Predicated region
      $region113: #{conv_module_forward.1} parent=5 // pred_check
        %p1508 = pneg %p1507
      $region114: #{conv_module_forward.1} parent=5 // pred_check_branch
        %1510 = sbr.rel (%p1508) target = $region116
      $region115: #{conv_module_forward.1} parent=5 // pred_region
        %s1511 = ssub.s32 %s28, 2
        // Predicated region
        $region117: #{conv_module_forward.1} parent=115 // pred_check
          %p1512 = pneg %p314
        $region118: #{conv_module_forward.1} parent=115 // pred_check_branch
          %1514 = sbr.rel (%p1512) target = $region120
        $region119: #{conv_module_forward.1} parent=115 // pred_region
          %s1515 = sand.u32 %s299, 1
          %s1516 = scalar_lea.sflag [#allocation5], %s1515
          %s1517 = sand.u32 %s299, 1
          %s1518 = smul.addr %s1517, 16
          %s1519 = scalar_lea.vmem [#allocation17], %s1518
          %1521 = dma.done %s1516, 256
        $region120: #{conv_module_forward.1} parent=115 // pred_fallthru
          _
      $region116: #{conv_module_forward.1} parent=5 // pred_fallthru
        _
    $region6: #{conv_module_forward.1} parent=1 // loop_footer
      %s32 = sadd.s32 1, %s28
    $region7: #{conv_module_forward.1} parent=1 // loop_footer_branch
      %27 = sbr.rel target = $region3
    $region8: #{conv_module_forward.1} parent=1 // loop_exit
      _
    %1522 = vsyncpa [#allocation4], 1
    %s1523 = scalar_lea.sflag [#allocation4], 1
    %1524 = vsyncpa %s1523, 1
    %1525 = vsyncpa [#allocation7], 1
    %s1526 = scalar_lea.sflag [#allocation7], 1
    %1527 = vsyncpa %s1526, 1
    %1528 = vsyncpa [#allocation10], 1
    %1529 = vsyncpa [#allocation13], 1
    %1530 = vsyncpa [#allocation16], 1
    %1531 = vsyncpa [#allocation5], 1
    %s1532 = scalar_lea.sflag [#allocation5], 1
    %1533 = vsyncpa %s1532, 1

</llo_original>
